<compile_context>
chip_gen: v7x
topology: tpu7x:2x2x1
jax: 0.10.0
libtpu: 0.0.40
codegen_flags: <defaults>
</compile_context>

<pallas_src>
import functools

import jax
import jax.numpy as jnp
from jax.experimental import pallas as pl
from jax.experimental.pallas import tpu as pltpu


def _const_index_map(ndim):
    def idx(i):
        return (0,) * ndim
    return idx


def _roll_lanes(a, shift):
    """Cyclic rotation along the lane (last) axis of an (NB, C, P) array.

    Done on a 2-D (NB*C, P) view so the XLU rotate stays rank-2; the reshape is
    layout-free when C is a multiple of the f32 sublane tile (8).
    """
    nb, c, p = a.shape
    if shift % p == 0:
        return a
    return pltpu.roll(a.reshape(nb * c, p), shift, axis=1).reshape(nb, c, p)


def normal_block_kernel(
    x_ref,     # (NB, C, P) input block (storage dtype: f32 or bf16)
    wfm_ref,   # (C, P) f32  freq tap for x[f-1]; SSN scale folded, f==0 lanes zeroed
    wfc_ref,   # (C, P) f32  freq tap for x[f]
    wfp_ref,   # (C, P) f32  freq tap for x[f+1]; f==F-1 lanes zeroed
    bf_ref,    # (C, P) f32  freq bias + SSN shift
    wtm_ref,   # (C, P) f32  time tap for x2[t-d]; BN scale folded, t<d lanes zeroed
    wtc_ref,   # (C, P) f32  time tap for x2[t]
    wtp_ref,   # (C, P) f32  time tap for x2[t+d]; t>=T-d lanes zeroed
    bt_ref,    # (C, 1) f32  time bias + BN shift
    wpw_ref,   # (C, C) bf16 1x1 pointwise conv weight
    bpw_ref,   # (C, 1) f32  pointwise bias
    o_ref,     # (NB, C, P) output block (storage dtype)
    *,
    F: int,
    T: int,
    d: int,
):
    NB, C, P = x_ref.shape
    x = x_ref[...].astype(jnp.float32)                         # (NB, C, P)

    # ---- depthwise (3,1) freq conv ('same'): edge zeroing folded into taps.
    x_m1 = _roll_lanes(x, T)                                   # x[f-1]
    x_p1 = _roll_lanes(x, P - T)                               # x[f+1]
    x1 = (x_m1 * wfm_ref[...][None] + x * wfc_ref[...][None]
          + x_p1 * wfp_ref[...][None] + bf_ref[...][None])     # (NB, C, P)

    # ---- mean over frequency via log2(F) cyclic roll-add tree; the result is
    # already replicated over frequency so the later broadcast is free.
    s = x1
    shift = T
    while shift < P:                                           # F is power of two
        s = s + _roll_lanes(s, shift)
        shift *= 2
    x2 = s * (1.0 / F)

    # ---- depthwise (1,3) dilated time conv ('same'): edges folded into taps.
    x2_m = _roll_lanes(x2, d)                                  # x2[t-d]
    x2_p = _roll_lanes(x2, P - d)                              # x2[t+d]
    h = (x2_m * wtm_ref[...][None] + x2 * wtc_ref[...][None]
         + x2_p * wtp_ref[...][None] + bt_ref[...][None])
    h = h * jax.nn.sigmoid(h)                                  # SiLU

    # ---- 1x1 pointwise conv: per-sample channel mix as a batched MXU matmul,
    # bf16 operands with f32 accumulation.
    w = jnp.broadcast_to(wpw_ref[...][None], (NB, C, C))       # bf16
    h = jax.lax.dot_general(
        w, h.astype(jnp.bfloat16),
        dimension_numbers=(((2,), (1,)), ((0,), (0,))),
        preferred_element_type=jnp.float32)                    # (NB, C, P) f32
    h = h + bpw_ref[...][None]
    # Dropout2d(p): identity in eval mode.

    # ---- residual + ReLU (x2 branch already replicated over frequency).
    o_ref[...] = jnp.maximum(x + x1 + h, 0.0).astype(o_ref.dtype)


def normal_block(x, params, *, dilation=1, samples_per_block=None,
                 storage_dtype=None):
    """x: (N, C, F, T) float32  ->  (N, C, F, T) float32."""
    N, C, F, T = x.shape
    P = F * T
    d = dilation
    assert T > d >= 1, "'same' time conv assumes T > dilation"
    assert F >= 1 and (F & (F - 1)) == 0, "freq roll-add tree assumes power-of-two F"

    sdt = jnp.dtype(storage_dtype) if storage_dtype is not None else x.dtype
    itemsize = sdt.itemsize
    f32 = jnp.float32

    # param footprint: 7x (C,P) f32 taps + 2x (C,1) f32 biases + (C,C) bf16
    param_bytes = 7 * C * P * 4 + 2 * C * 4 + C * C * 2

    # ---- grid / block sizing ------------------------------------------------
    # Prefer >= 4 grid chunks (>= 2 when N is tiny) so input DMA / writeback
    # pipeline behind compute and both v7x TensorCores get work, while keeping
    # blocks <= ~256 KiB so the working set stays far below the scoped VMEM
    # defaults (16 MiB v5e, 32 MiB v6e/v7x).
    if samples_per_block is None:
        bytes_per_sample = C * P * itemsize
        nb = max(1, min(N,
                        (256 * 1024) // max(bytes_per_sample, 1),
                        max(1, N // 4)))
        while N % nb:
            nb -= 1

        def est(nb_):
            blk = nb_ * C * P
            # in + out double-buffered + ~10 full-block f32 temporaries + params
            return 4 * blk * itemsize + 10 * blk * 4 + param_bytes

        while nb > 1 and est(nb) > 12 * 1024 * 1024:
            nb = max(1, nb // 2)
            while N % nb:
                nb -= 1
        samples_per_block = nb
    NB = samples_per_block
    assert N % NB == 0
    num_chunks = N // NB

    # ---- fold norms / edge masks into lane-resolved taps (plain-JAX glue) ----
    ssn_s = params["ssn_scale"].astype(f32)                    # (C, F)
    ssn_b = params["ssn_shift"].astype(f32)
    w2 = params["w2"].astype(f32)                              # (C, 3)
    b2 = params["b2"].astype(f32)                              # (C,)

    def expand_cf(a_cf):                                       # (C, F) -> (C, P)
        return jnp.broadcast_to(a_cf[:, :, None], (C, F, T)).reshape(C, P)

    # (3,1) freq-conv taps with SubSpectralNorm folded; zero the lanes that a
    # cyclic lane-roll would wrap across the zero-padded frequency edges.
    wfm = expand_cf(ssn_s * w2[:, 0:1]).at[:, :T].set(0.0)
    wfc = expand_cf(ssn_s * w2[:, 1:2])
    wfp = expand_cf(ssn_s * w2[:, 2:3]).at[:, P - T:].set(0.0)
    bf = expand_cf(ssn_s * b2[:, None] + ssn_b)

    # (1,3) dilated time-conv taps with BatchNorm folded; the time-edge zero
    # padding is folded into the lane-resolved taps as well.
    bn1s = params["bn1_scale"].astype(f32)                     # (C,)
    bn1b = params["bn1_shift"].astype(f32)
    wt = bn1s[:, None] * params["wt"].astype(f32)              # (C, 3)
    t_idx = jnp.arange(P, dtype=jnp.int32) % T                 # (P,)
    wtm = jnp.where((t_idx >= d)[None, :], wt[:, 0:1], 0.0)
    wtc = jnp.broadcast_to(wt[:, 1:2], (C, P))
    wtp = jnp.where((t_idx < T - d)[None, :], wt[:, 2:3], 0.0)
    bt = (bn1s * params["bt"].astype(f32) + bn1b)[:, None]     # (C, 1)

    wpw = params["wpw"].astype(jnp.bfloat16)                   # (C, C)
    bpw = params["bpw"].astype(f32)[:, None]                   # (C, 1)

    p_list = [wfm, wfc, wfp, bf, wtm, wtc, wtp, bt, wpw, bpw]
    x3d = x.reshape(N, C, P).astype(sdt)                       # lane-dense: P >= 128

    kernel = functools.partial(normal_block_kernel, F=F, T=T, d=d)

    def build(single_buffer_params):
        def const_spec(a):
            if single_buffer_params:
                return pl.BlockSpec(a.shape, _const_index_map(a.ndim),
                                    pipeline_mode=pl.Buffered(1))
            return pl.BlockSpec(a.shape, _const_index_map(a.ndim))
        return pl.pallas_call(
            kernel,
            out_shape=jax.ShapeDtypeStruct((N, C, P), sdt),
            grid=(num_chunks,),
            in_specs=[pl.BlockSpec((NB, C, P), lambda i: (i, 0, 0))]
                    + [const_spec(a) for a in p_list],
            out_specs=pl.BlockSpec((NB, C, P), lambda i: (i, 0, 0)),
            compiler_params=pltpu.CompilerParams(
                dimension_semantics=("parallel",),
                vmem_limit_bytes=32 * 1024 * 1024),
        )

    try:
        out3d = jax.block_until_ready(build(True)(x3d, *p_list))
    except Exception:
        # pl.Buffered(1) single-buffering unavailable -> default double-buffering
        out3d = jax.block_until_ready(build(False)(x3d, *p_list))

    return out3d.reshape(N, C, F, T).astype(x.dtype)


def make_params(key, C, F, sub_bands=4, eps=1e-5):
    """Deterministic synthetic parameters; BN stats folded to scale/shift."""
    ks = jax.random.split(key, 16)
    w2 = 0.3 * jax.random.normal(ks[0], (C, 3), jnp.float32)
    b2 = 0.1 * jax.random.normal(ks[1], (C,), jnp.float32)
    g_ss = 1.0 + 0.1 * jax.random.normal(ks[2], (C * sub_bands,), jnp.float32)
    be_ss = 0.1 * jax.random.normal(ks[3], (C * sub_bands,), jnp.float32)
    mu_ss = 0.1 * jax.random.normal(ks[4], (C * sub_bands,), jnp.float32)
    var_ss = 0.5 + jax.random.uniform(ks[5], (C * sub_bands,), jnp.float32)
    sc_ss = g_ss / jnp.sqrt(var_ss + eps)
    sh_ss = be_ss - mu_ss * sc_ss
    ssn_scale = jnp.repeat(sc_ss.reshape(C, sub_bands), F // sub_bands, axis=1)
    ssn_shift = jnp.repeat(sh_ss.reshape(C, sub_bands), F // sub_bands, axis=1)
    wt = 0.3 * jax.random.normal(ks[6], (C, 3), jnp.float32)
    bt = 0.1 * jax.random.normal(ks[7], (C,), jnp.float32)
    g1 = 1.0 + 0.1 * jax.random.normal(ks[8], (C,), jnp.float32)
    be1 = 0.1 * jax.random.normal(ks[9], (C,), jnp.float32)
    mu1 = 0.1 * jax.random.normal(ks[10], (C,), jnp.float32)
    var1 = 0.5 + jax.random.uniform(ks[11], (C,), jnp.float32)
    bn1_scale = g1 / jnp.sqrt(var1 + eps)
    bn1_shift = be1 - mu1 * bn1_scale
    wpw = (1.0 / jnp.sqrt(C)) * jax.random.normal(ks[12], (C, C), jnp.float32)
    bpw = 0.1 * jax.random.normal(ks[13], (C,), jnp.float32)
    return dict(w2=w2, b2=b2, ssn_scale=ssn_scale, ssn_shift=ssn_shift,
                wt=wt, bt=bt, bn1_scale=bn1_scale, bn1_shift=bn1_shift,
                wpw=wpw, bpw=bpw)


def ref_forward(x, p, dilation=1):
    """Pure-JAX f32 reference (matches the PyTorch block forward in eval mode)."""
    N, C, F, T = x.shape
    d = dilation
    xp = jnp.pad(x, ((0, 0), (0, 0), (1, 1), (0, 0)))
    w2 = p["w2"]
    y1 = (w2[None, :, 0, None, None] * xp[:, :, 0:F, :]
          + w2[None, :, 1, None, None] * xp[:, :, 1:F + 1, :]
          + w2[None, :, 2, None, None] * xp[:, :, 2:F + 2, :]
          + p["b2"][None, :, None, None])
    x1 = y1 * p["ssn_scale"][None, :, :, None] + p["ssn_shift"][None, :, :, None]
    x2 = jnp.mean(x1, axis=2, keepdims=True)
    x2p = jnp.pad(x2, ((0, 0), (0, 0), (0, 0), (d, d)))
    wt = p["wt"]
    h = (wt[None, :, 0, None, None] * x2p[..., 0:T]
         + wt[None, :, 1, None, None] * x2p[..., d:T + d]
         + wt[None, :, 2, None, None] * x2p[..., 2 * d:T + 2 * d]
         + p["bt"][None, :, None, None])
    h = h * p["bn1_scale"][None, :, None, None] + p["bn1_shift"][None, :, None, None]
    h = h * jax.nn.sigmoid(h)
    h = jnp.einsum("oc,ncft->noft", p["wpw"], h) + p["bpw"][None, :, None, None]
    x2b = jnp.broadcast_to(h, (N, C, F, T))
    return jnp.maximum(x + x1 + x2b, 0.0)


if __name__ == "__main__":
    N, C, F, T = 2, 8, 16, 16          # F divisible by sub_bands=4, power of two
    dilation = 1

    key = jax.random.PRNGKey(0)
    kx, kp = jax.random.split(key)
    x = jax.random.normal(kx, (N, C, F, T), jnp.float32)
    params = make_params(kp, C, F)

    ref = ref_forward(x, params, dilation=dilation)

    # f32 storage path (default; v5e-friendly)
    out = jax.block_until_ready(normal_block(x, params, dilation=dilation))
    assert out.shape == (N, C, F, T) and out.dtype == jnp.float32
    err = float(jnp.max(jnp.abs(out - ref)))
    # tolerance covers the bf16 MXU operands of the 1x1 conv (f32 everywhere else)
    assert err < 3e-2, f"f32-storage path max abs err {err}"

    # bf16 storage path (HBM-roofline option for v6e / v7x)
    out_b = jax.block_until_ready(
        normal_block(x, params, dilation=dilation, storage_dtype=jnp.bfloat16))
    err_b = float(jnp.max(jnp.abs(out_b - ref)))
    assert err_b < 1.5e-1, f"bf16-storage path max abs err {err_b}"

    print("KERNEL_OK")
</pallas_src>

<mosaic_0001>
module attributes {stable_mosaic.version = 11 : i64} {
  func.func @normal_block_kernel(%arg0: i32, %arg1: memref<1x8x256xf32, #tpu.memory_space<vmem>>, %arg2: memref<8x256xf32, #tpu.memory_space<vmem>>, %arg3: memref<8x256xf32, #tpu.memory_space<vmem>>, %arg4: memref<8x256xf32, #tpu.memory_space<vmem>>, %arg5: memref<8x256xf32, #tpu.memory_space<vmem>>, %arg6: memref<8x256xf32, #tpu.memory_space<vmem>>, %arg7: memref<8x256xf32, #tpu.memory_space<vmem>>, %arg8: memref<8x256xf32, #tpu.memory_space<vmem>>, %arg9: memref<8x1xf32, #tpu.memory_space<vmem>>, %arg10: memref<8x8xbf16, #tpu.memory_space<vmem>>, %arg11: memref<8x1xf32, #tpu.memory_space<vmem>>, %arg12: memref<1x8x256xf32, #tpu.memory_space<vmem>>) attributes {dimension_semantics = [#tpu.dimension_semantics<parallel>], iteration_bounds = array<i64: 2>, scalar_prefetch = 0 : i64, scratch_operands = 0 : i64, tpu.core_type = #tpu.core_type<tc>, window_params = [{transform_indices = @transform_0, window_bounds = array<i64: 1, 8, 256>}, {pipeline_mode = #tpu.pipeline_mode<synchronous>, transform_indices = @transform_1, window_bounds = array<i64: 8, 256>}, {pipeline_mode = #tpu.pipeline_mode<synchronous>, transform_indices = @transform_2, window_bounds = array<i64: 8, 256>}, {pipeline_mode = #tpu.pipeline_mode<synchronous>, transform_indices = @transform_3, window_bounds = array<i64: 8, 256>}, {pipeline_mode = #tpu.pipeline_mode<synchronous>, transform_indices = @transform_4, window_bounds = array<i64: 8, 256>}, {pipeline_mode = #tpu.pipeline_mode<synchronous>, transform_indices = @transform_5, window_bounds = array<i64: 8, 256>}, {pipeline_mode = #tpu.pipeline_mode<synchronous>, transform_indices = @transform_6, window_bounds = array<i64: 8, 256>}, {pipeline_mode = #tpu.pipeline_mode<synchronous>, transform_indices = @transform_7, window_bounds = array<i64: 8, 256>}, {pipeline_mode = #tpu.pipeline_mode<synchronous>, transform_indices = @transform_8, window_bounds = array<i64: 8, 1>}, {pipeline_mode = #tpu.pipeline_mode<synchronous>, transform_indices = @transform_9, window_bounds = array<i64: 8, 8>}, {pipeline_mode = #tpu.pipeline_mode<synchronous>, transform_indices = @transform_10, window_bounds = array<i64: 8, 1>}, {transform_indices = @transform_11, window_bounds = array<i64: 1, 8, 256>}]} {
    %c0 = arith.constant 0 : index
    %c0_0 = arith.constant 0 : index
    %c0_1 = arith.constant 0 : index
    %0 = vector.load %arg1[%c0, %c0_0, %c0_1] : memref<1x8x256xf32, #tpu.memory_space<vmem>>, vector<1x8x256xf32>
    %1 = vector.shape_cast %0 : vector<1x8x256xf32> to vector<8x256xf32>
    %c16_i32 = arith.constant 16 : i32
    %2 = tpu.dynamic_rotate %1 by %c16_i32 dim 1 : vector<8x256xf32>, i32 -> vector<8x256xf32>
    %3 = vector.shape_cast %2 : vector<8x256xf32> to vector<1x8x256xf32>
    %4 = vector.shape_cast %0 : vector<1x8x256xf32> to vector<8x256xf32>
    %c240_i32 = arith.constant 240 : i32
    %5 = tpu.dynamic_rotate %4 by %c240_i32 dim 1 : vector<8x256xf32>, i32 -> vector<8x256xf32>
    %6 = vector.shape_cast %5 : vector<8x256xf32> to vector<1x8x256xf32>
    %c0_2 = arith.constant 0 : index
    %c0_3 = arith.constant 0 : index
    %7 = vector.load %arg2[%c0_2, %c0_3] : memref<8x256xf32, #tpu.memory_space<vmem>>, vector<8x256xf32>
    %8 = vector.shape_cast %7 : vector<8x256xf32> to vector<1x8x256xf32>
    %9 = arith.mulf %3, %8 : vector<1x8x256xf32>
    %c0_4 = arith.constant 0 : index
    %c0_5 = arith.constant 0 : index
    %10 = vector.load %arg3[%c0_4, %c0_5] : memref<8x256xf32, #tpu.memory_space<vmem>>, vector<8x256xf32>
    %11 = vector.shape_cast %10 : vector<8x256xf32> to vector<1x8x256xf32>
    %12 = arith.mulf %0, %11 : vector<1x8x256xf32>
    %13 = arith.addf %9, %12 : vector<1x8x256xf32>
    %c0_6 = arith.constant 0 : index
    %c0_7 = arith.constant 0 : index
    %14 = vector.load %arg4[%c0_6, %c0_7] : memref<8x256xf32, #tpu.memory_space<vmem>>, vector<8x256xf32>
    %15 = vector.shape_cast %14 : vector<8x256xf32> to vector<1x8x256xf32>
    %16 = arith.mulf %6, %15 : vector<1x8x256xf32>
    %17 = arith.addf %13, %16 : vector<1x8x256xf32>
    %c0_8 = arith.constant 0 : index
    %c0_9 = arith.constant 0 : index
    %18 = vector.load %arg5[%c0_8, %c0_9] : memref<8x256xf32, #tpu.memory_space<vmem>>, vector<8x256xf32>
    %19 = vector.shape_cast %18 : vector<8x256xf32> to vector<1x8x256xf32>
    %20 = arith.addf %17, %19 : vector<1x8x256xf32>
    %21 = vector.shape_cast %20 : vector<1x8x256xf32> to vector<8x256xf32>
    %c16_i32_10 = arith.constant 16 : i32
    %22 = tpu.dynamic_rotate %21 by %c16_i32_10 dim 1 : vector<8x256xf32>, i32 -> vector<8x256xf32>
    %23 = vector.shape_cast %22 : vector<8x256xf32> to vector<1x8x256xf32>
    %24 = arith.addf %20, %23 : vector<1x8x256xf32>
    %25 = vector.shape_cast %24 : vector<1x8x256xf32> to vector<8x256xf32>
    %c32_i32 = arith.constant 32 : i32
    %26 = tpu.dynamic_rotate %25 by %c32_i32 dim 1 : vector<8x256xf32>, i32 -> vector<8x256xf32>
    %27 = vector.shape_cast %26 : vector<8x256xf32> to vector<1x8x256xf32>
    %28 = arith.addf %24, %27 : vector<1x8x256xf32>
    %29 = vector.shape_cast %28 : vector<1x8x256xf32> to vector<8x256xf32>
    %c64_i32 = arith.constant 64 : i32
    %30 = tpu.dynamic_rotate %29 by %c64_i32 dim 1 : vector<8x256xf32>, i32 -> vector<8x256xf32>
    %31 = vector.shape_cast %30 : vector<8x256xf32> to vector<1x8x256xf32>
    %32 = arith.addf %28, %31 : vector<1x8x256xf32>
    %33 = vector.shape_cast %32 : vector<1x8x256xf32> to vector<8x256xf32>
    %c128_i32 = arith.constant 128 : i32
    %34 = tpu.dynamic_rotate %33 by %c128_i32 dim 1 : vector<8x256xf32>, i32 -> vector<8x256xf32>
    %35 = vector.shape_cast %34 : vector<8x256xf32> to vector<1x8x256xf32>
    %36 = arith.addf %32, %35 : vector<1x8x256xf32>
    %cst = arith.constant 6.250000e-02 : f32
    %37 = vector.broadcast %cst : f32 to vector<1x8x256xf32>
    %38 = arith.mulf %36, %37 : vector<1x8x256xf32>
    %39 = vector.shape_cast %38 : vector<1x8x256xf32> to vector<8x256xf32>
    %c1_i32 = arith.constant 1 : i32
    %40 = tpu.dynamic_rotate %39 by %c1_i32 dim 1 : vector<8x256xf32>, i32 -> vector<8x256xf32>
    %41 = vector.shape_cast %40 : vector<8x256xf32> to vector<1x8x256xf32>
    %42 = vector.shape_cast %38 : vector<1x8x256xf32> to vector<8x256xf32>
    %c255_i32 = arith.constant 255 : i32
    %43 = tpu.dynamic_rotate %42 by %c255_i32 dim 1 : vector<8x256xf32>, i32 -> vector<8x256xf32>
    %44 = vector.shape_cast %43 : vector<8x256xf32> to vector<1x8x256xf32>
    %c0_11 = arith.constant 0 : index
    %c0_12 = arith.constant 0 : index
    %45 = vector.load %arg6[%c0_11, %c0_12] : memref<8x256xf32, #tpu.memory_space<vmem>>, vector<8x256xf32>
    %46 = vector.shape_cast %45 : vector<8x256xf32> to vector<1x8x256xf32>
    %47 = arith.mulf %41, %46 : vector<1x8x256xf32>
    %c0_13 = arith.constant 0 : index
    %c0_14 = arith.constant 0 : index
    %48 = vector.load %arg7[%c0_13, %c0_14] : memref<8x256xf32, #tpu.memory_space<vmem>>, vector<8x256xf32>
    %49 = vector.shape_cast %48 : vector<8x256xf32> to vector<1x8x256xf32>
    %50 = arith.mulf %38, %49 : vector<1x8x256xf32>
    %51 = arith.addf %47, %50 : vector<1x8x256xf32>
    %c0_15 = arith.constant 0 : index
    %c0_16 = arith.constant 0 : index
    %52 = vector.load %arg8[%c0_15, %c0_16] : memref<8x256xf32, #tpu.memory_space<vmem>>, vector<8x256xf32>
    %53 = vector.shape_cast %52 : vector<8x256xf32> to vector<1x8x256xf32>
    %54 = arith.mulf %44, %53 : vector<1x8x256xf32>
    %55 = arith.addf %51, %54 : vector<1x8x256xf32>
    %c0_17 = arith.constant 0 : index
    %c0_18 = arith.constant 0 : index
    %56 = vector.load %arg9[%c0_17, %c0_18] : memref<8x1xf32, #tpu.memory_space<vmem>>, vector<8x1xf32>
    %57 = vector.shape_cast %56 : vector<8x1xf32> to vector<1x8x1xf32>
    %58 = vector.broadcast %57 : vector<1x8x1xf32> to vector<1x8x256xf32>
    %59 = arith.addf %55, %58 : vector<1x8x256xf32>
    %60 = arith.negf %59 : vector<1x8x256xf32>
    %61 = math.exp %60 : vector<1x8x256xf32>
    %cst_19 = arith.constant 1.000000e+00 : f32
    %62 = vector.broadcast %cst_19 : f32 to vector<1x8x256xf32>
    %63 = arith.addf %62, %61 : vector<1x8x256xf32>
    %64 = arith.divf %62, %63 : vector<1x8x256xf32>
    %65 = arith.mulf %59, %64 : vector<1x8x256xf32>
    %c0_20 = arith.constant 0 : index
    %c0_21 = arith.constant 0 : index
    %66 = vector.load %arg10[%c0_20, %c0_21] : memref<8x8xbf16, #tpu.memory_space<vmem>>, vector<8x8xbf16>
    %67 = vector.shape_cast %66 : vector<8x8xbf16> to vector<1x8x8xbf16>
    %68 = arith.truncf %65 : vector<1x8x256xf32> to vector<1x8x256xbf16>
    %cst_22 = arith.constant dense<0.000000e+00> : vector<1x8x256xf32>
    %69 = tpu.matmul %67, %68, %cst_22 {dimension_numbers = #tpu.dot_dimension_numbers<[2], [1], [1], [2], [0, 0, 0, 1, 1, 2], [0], [0]>} : vector<1x8x8xbf16>, vector<1x8x256xbf16>, vector<1x8x256xf32> -> vector<1x8x256xf32>
    %c0_23 = arith.constant 0 : index
    %c0_24 = arith.constant 0 : index
    %70 = vector.load %arg11[%c0_23, %c0_24] : memref<8x1xf32, #tpu.memory_space<vmem>>, vector<8x1xf32>
    %71 = vector.shape_cast %70 : vector<8x1xf32> to vector<1x8x1xf32>
    %72 = vector.broadcast %71 : vector<1x8x1xf32> to vector<1x8x256xf32>
    %73 = arith.addf %69, %72 : vector<1x8x256xf32>
    %74 = arith.addf %0, %20 : vector<1x8x256xf32>
    %75 = arith.addf %74, %73 : vector<1x8x256xf32>
    %cst_25 = arith.constant 0.000000e+00 : f32
    %76 = vector.broadcast %cst_25 : f32 to vector<1x8x256xf32>
    %77 = arith.maximumf %75, %76 : vector<1x8x256xf32>
    %c0_26 = arith.constant 0 : index
    %c0_27 = arith.constant 0 : index
    %c0_28 = arith.constant 0 : index
    %78 = vector.load %arg12[%c0_26, %c0_27, %c0_28] : memref<1x8x256xf32, #tpu.memory_space<vmem>>, vector<1x8x256xf32>
    tpu.vector_store %arg12[%c0_26, %c0_27, %c0_28], %77 {strides = array<i32>} : memref<1x8x256xf32, #tpu.memory_space<vmem>>, vector<1x8x256xf32>,
    return
  }
  func.func @transform_0(%arg0: i32) -> (i32, i32, i32) {
    %c0_i32 = arith.constant 0 : i32
    %c0_i32_0 = arith.constant 0 : i32
    %c0_i32_1 = arith.constant 0 : i32
    return %arg0, %c0_i32, %c0_i32_0 : i32, i32, i32
  }
  func.func @transform_1(%arg0: i32) -> (i32, i32) {
    %c0_i32 = arith.constant 0 : i32
    %c0_i32_0 = arith.constant 0 : i32
    %c0_i32_1 = arith.constant 0 : i32
    return %c0_i32, %c0_i32_0 : i32, i32
  }
  func.func @transform_2(%arg0: i32) -> (i32, i32) {
    %c0_i32 = arith.constant 0 : i32
    %c0_i32_0 = arith.constant 0 : i32
    %c0_i32_1 = arith.constant 0 : i32
    return %c0_i32, %c0_i32_0 : i32, i32
  }
  func.func @transform_3(%arg0: i32) -> (i32, i32) {
    %c0_i32 = arith.constant 0 : i32
    %c0_i32_0 = arith.constant 0 : i32
    %c0_i32_1 = arith.constant 0 : i32
    return %c0_i32, %c0_i32_0 : i32, i32
  }
  func.func @transform_4(%arg0: i32) -> (i32, i32) {
    %c0_i32 = arith.constant 0 : i32
    %c0_i32_0 = arith.constant 0 : i32
    %c0_i32_1 = arith.constant 0 : i32
    return %c0_i32, %c0_i32_0 : i32, i32
  }
  func.func @transform_5(%arg0: i32) -> (i32, i32) {
    %c0_i32 = arith.constant 0 : i32
    %c0_i32_0 = arith.constant 0 : i32
    %c0_i32_1 = arith.constant 0 : i32
    return %c0_i32, %c0_i32_0 : i32, i32
  }
  func.func @transform_6(%arg0: i32) -> (i32, i32) {
    %c0_i32 = arith.constant 0 : i32
    %c0_i32_0 = arith.constant 0 : i32
    %c0_i32_1 = arith.constant 0 : i32
    return %c0_i32, %c0_i32_0 : i32, i32
  }
  func.func @transform_7(%arg0: i32) -> (i32, i32) {
    %c0_i32 = arith.constant 0 : i32
    %c0_i32_0 = arith.constant 0 : i32
    %c0_i32_1 = arith.constant 0 : i32
    return %c0_i32, %c0_i32_0 : i32, i32
  }
  func.func @transform_8(%arg0: i32) -> (i32, i32) {
    %c0_i32 = arith.constant 0 : i32
    %c0_i32_0 = arith.constant 0 : i32
    %c0_i32_1 = arith.constant 0 : i32
    return %c0_i32, %c0_i32_0 : i32, i32
  }
  func.func @transform_9(%arg0: i32) -> (i32, i32) {
    %c0_i32 = arith.constant 0 : i32
    %c0_i32_0 = arith.constant 0 : i32
    %c0_i32_1 = arith.constant 0 : i32
    return %c0_i32, %c0_i32_0 : i32, i32
  }
  func.func @transform_10(%arg0: i32) -> (i32, i32) {
    %c0_i32 = arith.constant 0 : i32
    %c0_i32_0 = arith.constant 0 : i32
    %c0_i32_1 = arith.constant 0 : i32
    return %c0_i32, %c0_i32_0 : i32, i32
  }
  func.func @transform_11(%arg0: i32) -> (i32, i32, i32) {
    %c0_i32 = arith.constant 0 : i32
    %c0_i32_0 = arith.constant 0 : i32
    %c0_i32_1 = arith.constant 0 : i32
    return %arg0, %c0_i32, %c0_i32_0 : i32, i32, i32
  }
}

module attributes {stable_mosaic.version = 11 : i64} {
  func.func @normal_block_kernel(%arg0: i32, %arg1: memref<1x8x256xf32, #tpu.memory_space<vmem>>, %arg2: memref<8x256xf32, #tpu.memory_space<vmem>>, %arg3: memref<8x256xf32, #tpu.memory_space<vmem>>, %arg4: memref<8x256xf32, #tpu.memory_space<vmem>>, %arg5: memref<8x256xf32, #tpu.memory_space<vmem>>, %arg6: memref<8x256xf32, #tpu.memory_space<vmem>>, %arg7: memref<8x256xf32, #tpu.memory_space<vmem>>, %arg8: memref<8x256xf32, #tpu.memory_space<vmem>>, %arg9: memref<8x1xf32, #tpu.memory_space<vmem>>, %arg10: memref<8x8xbf16, #tpu.memory_space<vmem>>, %arg11: memref<8x1xf32, #tpu.memory_space<vmem>>, %arg12: memref<1x8x256xf32, #tpu.memory_space<vmem>>) attributes {dimension_semantics = [#tpu.dimension_semantics<parallel>], iteration_bounds = array<i64: 2>, scalar_prefetch = 0 : i64, scratch_operands = 0 : i64, tpu.core_type = #tpu.core_type<tc>, window_params = [{transform_indices = @transform_0, window_bounds = array<i64: 1, 8, 256>}, {pipeline_mode = #tpu.pipeline_mode<synchronous>, transform_indices = @transform_1, window_bounds = array<i64: 8, 256>}, {pipeline_mode = #tpu.pipeline_mode<synchronous>, transform_indices = @transform_2, window_bounds = array<i64: 8, 256>}, {pipeline_mode = #tpu.pipeline_mode<synchronous>, transform_indices = @transform_3, window_bounds = array<i64: 8, 256>}, {pipeline_mode = #tpu.pipeline_mode<synchronous>, transform_indices = @transform_4, window_bounds = array<i64: 8, 256>}, {pipeline_mode = #tpu.pipeline_mode<synchronous>, transform_indices = @transform_5, window_bounds = array<i64: 8, 256>}, {pipeline_mode = #tpu.pipeline_mode<synchronous>, transform_indices = @transform_6, window_bounds = array<i64: 8, 256>}, {pipeline_mode = #tpu.pipeline_mode<synchronous>, transform_indices = @transform_7, window_bounds = array<i64: 8, 256>}, {pipeline_mode = #tpu.pipeline_mode<synchronous>, transform_indices = @transform_8, window_bounds = array<i64: 8, 1>}, {pipeline_mode = #tpu.pipeline_mode<synchronous>, transform_indices = @transform_9, window_bounds = array<i64: 8, 8>}, {pipeline_mode = #tpu.pipeline_mode<synchronous>, transform_indices = @transform_10, window_bounds = array<i64: 8, 1>}, {transform_indices = @transform_11, window_bounds = array<i64: 1, 8, 256>}]} {
    %c0 = arith.constant 0 : index
    %c0_0 = arith.constant 0 : index
    %c0_1 = arith.constant 0 : index
    %0 = vector.load %arg1[%c0, %c0_0, %c0_1] : memref<1x8x256xf32, #tpu.memory_space<vmem>>, vector<1x8x256xf32>
    %1 = vector.shape_cast %0 : vector<1x8x256xf32> to vector<8x256xf32>
    %c16_i32 = arith.constant 16 : i32
    %2 = tpu.dynamic_rotate %1 by %c16_i32 dim 1 : vector<8x256xf32>, i32 -> vector<8x256xf32>
    %3 = vector.shape_cast %2 : vector<8x256xf32> to vector<1x8x256xf32>
    %4 = vector.shape_cast %0 : vector<1x8x256xf32> to vector<8x256xf32>
    %c240_i32 = arith.constant 240 : i32
    %5 = tpu.dynamic_rotate %4 by %c240_i32 dim 1 : vector<8x256xf32>, i32 -> vector<8x256xf32>
    %6 = vector.shape_cast %5 : vector<8x256xf32> to vector<1x8x256xf32>
    %c0_2 = arith.constant 0 : index
    %c0_3 = arith.constant 0 : index
    %7 = vector.load %arg2[%c0_2, %c0_3] : memref<8x256xf32, #tpu.memory_space<vmem>>, vector<8x256xf32>
    %8 = vector.shape_cast %7 : vector<8x256xf32> to vector<1x8x256xf32>
    %9 = arith.mulf %3, %8 : vector<1x8x256xf32>
    %c0_4 = arith.constant 0 : index
    %c0_5 = arith.constant 0 : index
    %10 = vector.load %arg3[%c0_4, %c0_5] : memref<8x256xf32, #tpu.memory_space<vmem>>, vector<8x256xf32>
    %11 = vector.shape_cast %10 : vector<8x256xf32> to vector<1x8x256xf32>
    %12 = arith.mulf %0, %11 : vector<1x8x256xf32>
    %13 = arith.addf %9, %12 : vector<1x8x256xf32>
    %c0_6 = arith.constant 0 : index
    %c0_7 = arith.constant 0 : index
    %14 = vector.load %arg4[%c0_6, %c0_7] : memref<8x256xf32, #tpu.memory_space<vmem>>, vector<8x256xf32>
    %15 = vector.shape_cast %14 : vector<8x256xf32> to vector<1x8x256xf32>
    %16 = arith.mulf %6, %15 : vector<1x8x256xf32>
    %17 = arith.addf %13, %16 : vector<1x8x256xf32>
    %c0_8 = arith.constant 0 : index
    %c0_9 = arith.constant 0 : index
    %18 = vector.load %arg5[%c0_8, %c0_9] : memref<8x256xf32, #tpu.memory_space<vmem>>, vector<8x256xf32>
    %19 = vector.shape_cast %18 : vector<8x256xf32> to vector<1x8x256xf32>
    %20 = arith.addf %17, %19 : vector<1x8x256xf32>
    %21 = vector.shape_cast %20 : vector<1x8x256xf32> to vector<8x256xf32>
    %c16_i32_10 = arith.constant 16 : i32
    %22 = tpu.dynamic_rotate %21 by %c16_i32_10 dim 1 : vector<8x256xf32>, i32 -> vector<8x256xf32>
    %23 = vector.shape_cast %22 : vector<8x256xf32> to vector<1x8x256xf32>
    %24 = arith.addf %20, %23 : vector<1x8x256xf32>
    %25 = vector.shape_cast %24 : vector<1x8x256xf32> to vector<8x256xf32>
    %c32_i32 = arith.constant 32 : i32
    %26 = tpu.dynamic_rotate %25 by %c32_i32 dim 1 : vector<8x256xf32>, i32 -> vector<8x256xf32>
    %27 = vector.shape_cast %26 : vector<8x256xf32> to vector<1x8x256xf32>
    %28 = arith.addf %24, %27 : vector<1x8x256xf32>
    %29 = vector.shape_cast %28 : vector<1x8x256xf32> to vector<8x256xf32>
    %c64_i32 = arith.constant 64 : i32
    %30 = tpu.dynamic_rotate %29 by %c64_i32 dim 1 : vector<8x256xf32>, i32 -> vector<8x256xf32>
    %31 = vector.shape_cast %30 : vector<8x256xf32> to vector<1x8x256xf32>
    %32 = arith.addf %28, %31 : vector<1x8x256xf32>
    %33 = vector.shape_cast %32 : vector<1x8x256xf32> to vector<8x256xf32>
    %c128_i32 = arith.constant 128 : i32
    %34 = tpu.dynamic_rotate %33 by %c128_i32 dim 1 : vector<8x256xf32>, i32 -> vector<8x256xf32>
    %35 = vector.shape_cast %34 : vector<8x256xf32> to vector<1x8x256xf32>
    %36 = arith.addf %32, %35 : vector<1x8x256xf32>
    %cst = arith.constant 6.250000e-02 : f32
    %37 = vector.broadcast %cst : f32 to vector<1x8x256xf32>
    %38 = arith.mulf %36, %37 : vector<1x8x256xf32>
    %39 = vector.shape_cast %38 : vector<1x8x256xf32> to vector<8x256xf32>
    %c1_i32 = arith.constant 1 : i32
    %40 = tpu.dynamic_rotate %39 by %c1_i32 dim 1 : vector<8x256xf32>, i32 -> vector<8x256xf32>
    %41 = vector.shape_cast %40 : vector<8x256xf32> to vector<1x8x256xf32>
    %42 = vector.shape_cast %38 : vector<1x8x256xf32> to vector<8x256xf32>
    %c255_i32 = arith.constant 255 : i32
    %43 = tpu.dynamic_rotate %42 by %c255_i32 dim 1 : vector<8x256xf32>, i32 -> vector<8x256xf32>
    %44 = vector.shape_cast %43 : vector<8x256xf32> to vector<1x8x256xf32>
    %c0_11 = arith.constant 0 : index
    %c0_12 = arith.constant 0 : index
    %45 = vector.load %arg6[%c0_11, %c0_12] : memref<8x256xf32, #tpu.memory_space<vmem>>, vector<8x256xf32>
    %46 = vector.shape_cast %45 : vector<8x256xf32> to vector<1x8x256xf32>
    %47 = arith.mulf %41, %46 : vector<1x8x256xf32>
    %c0_13 = arith.constant 0 : index
    %c0_14 = arith.constant 0 : index
    %48 = vector.load %arg7[%c0_13, %c0_14] : memref<8x256xf32, #tpu.memory_space<vmem>>, vector<8x256xf32>
    %49 = vector.shape_cast %48 : vector<8x256xf32> to vector<1x8x256xf32>
    %50 = arith.mulf %38, %49 : vector<1x8x256xf32>
    %51 = arith.addf %47, %50 : vector<1x8x256xf32>
    %c0_15 = arith.constant 0 : index
    %c0_16 = arith.constant 0 : index
    %52 = vector.load %arg8[%c0_15, %c0_16] : memref<8x256xf32, #tpu.memory_space<vmem>>, vector<8x256xf32>
    %53 = vector.shape_cast %52 : vector<8x256xf32> to vector<1x8x256xf32>
    %54 = arith.mulf %44, %53 : vector<1x8x256xf32>
    %55 = arith.addf %51, %54 : vector<1x8x256xf32>
    %c0_17 = arith.constant 0 : index
    %c0_18 = arith.constant 0 : index
    %56 = vector.load %arg9[%c0_17, %c0_18] : memref<8x1xf32, #tpu.memory_space<vmem>>, vector<8x1xf32>
    %57 = vector.shape_cast %56 : vector<8x1xf32> to vector<1x8x1xf32>
    %58 = vector.broadcast %57 : vector<1x8x1xf32> to vector<1x8x256xf32>
    %59 = arith.addf %55, %58 : vector<1x8x256xf32>
    %60 = arith.negf %59 : vector<1x8x256xf32>
    %61 = math.exp %60 : vector<1x8x256xf32>
    %cst_19 = arith.constant 1.000000e+00 : f32
    %62 = vector.broadcast %cst_19 : f32 to vector<1x8x256xf32>
    %63 = arith.addf %62, %61 : vector<1x8x256xf32>
    %64 = arith.divf %62, %63 : vector<1x8x256xf32>
    %65 = arith.mulf %59, %64 : vector<1x8x256xf32>
    %c0_20 = arith.constant 0 : index
    %c0_21 = arith.constant 0 : index
    %66 = vector.load %arg10[%c0_20, %c0_21] : memref<8x8xbf16, #tpu.memory_space<vmem>>, vector<8x8xbf16>
    %67 = vector.shape_cast %66 : vector<8x8xbf16> to vector<1x8x8xbf16>
    %68 = arith.truncf %65 : vector<1x8x256xf32> to vector<1x8x256xbf16>
    %cst_22 = arith.constant dense<0.000000e+00> : vector<1x8x256xf32>
    %69 = tpu.matmul %67, %68, %cst_22 {dimension_numbers = #tpu.dot_dimension_numbers<[2], [1], [1], [2], [0, 0, 0, 1, 1, 2], [0], [0]>} : vector<1x8x8xbf16>, vector<1x8x256xbf16>, vector<1x8x256xf32> -> vector<1x8x256xf32>
    %c0_23 = arith.constant 0 : index
    %c0_24 = arith.constant 0 : index
    %70 = vector.load %arg11[%c0_23, %c0_24] : memref<8x1xf32, #tpu.memory_space<vmem>>, vector<8x1xf32>
    %71 = vector.shape_cast %70 : vector<8x1xf32> to vector<1x8x1xf32>
    %72 = vector.broadcast %71 : vector<1x8x1xf32> to vector<1x8x256xf32>
    %73 = arith.addf %69, %72 : vector<1x8x256xf32>
    %74 = arith.addf %0, %20 : vector<1x8x256xf32>
    %75 = arith.addf %74, %73 : vector<1x8x256xf32>
    %cst_25 = arith.constant 0.000000e+00 : f32
    %76 = vector.broadcast %cst_25 : f32 to vector<1x8x256xf32>
    %77 = arith.maximumf %75, %76 : vector<1x8x256xf32>
    %c0_26 = arith.constant 0 : index
    %c0_27 = arith.constant 0 : index
    %c0_28 = arith.constant 0 : index
    %78 = vector.load %arg12[%c0_26, %c0_27, %c0_28] : memref<1x8x256xf32, #tpu.memory_space<vmem>>, vector<1x8x256xf32>
    tpu.vector_store %arg12[%c0_26, %c0_27, %c0_28], %77 {strides = array<i32>} : memref<1x8x256xf32, #tpu.memory_space<vmem>>, vector<1x8x256xf32>,
    return
  }
  func.func @transform_0(%arg0: i32) -> (i32, i32, i32) {
    %c0_i32 = arith.constant 0 : i32
    %c0_i32_0 = arith.constant 0 : i32
    %c0_i32_1 = arith.constant 0 : i32
    return %arg0, %c0_i32, %c0_i32_0 : i32, i32, i32
  }
  func.func @transform_1(%arg0: i32) -> (i32, i32) {
    %c0_i32 = arith.constant 0 : i32
    %c0_i32_0 = arith.constant 0 : i32
    %c0_i32_1 = arith.constant 0 : i32
    return %c0_i32, %c0_i32_0 : i32, i32
  }
  func.func @transform_2(%arg0: i32) -> (i32, i32) {
    %c0_i32 = arith.constant 0 : i32
    %c0_i32_0 = arith.constant 0 : i32
    %c0_i32_1 = arith.constant 0 : i32
    return %c0_i32, %c0_i32_0 : i32, i32
  }
  func.func @transform_3(%arg0: i32) -> (i32, i32) {
    %c0_i32 = arith.constant 0 : i32
    %c0_i32_0 = arith.constant 0 : i32
    %c0_i32_1 = arith.constant 0 : i32
    return %c0_i32, %c0_i32_0 : i32, i32
  }
  func.func @transform_4(%arg0: i32) -> (i32, i32) {
    %c0_i32 = arith.constant 0 : i32
    %c0_i32_0 = arith.constant 0 : i32
    %c0_i32_1 = arith.constant 0 : i32
    return %c0_i32, %c0_i32_0 : i32, i32
  }
  func.func @transform_5(%arg0: i32) -> (i32, i32) {
    %c0_i32 = arith.constant 0 : i32
    %c0_i32_0 = arith.constant 0 : i32
    %c0_i32_1 = arith.constant 0 : i32
    return %c0_i32, %c0_i32_0 : i32, i32
  }
  func.func @transform_6(%arg0: i32) -> (i32, i32) {
    %c0_i32 = arith.constant 0 : i32
    %c0_i32_0 = arith.constant 0 : i32
    %c0_i32_1 = arith.constant 0 : i32
    return %c0_i32, %c0_i32_0 : i32, i32
  }
  func.func @transform_7(%arg0: i32) -> (i32, i32) {
    %c0_i32 = arith.constant 0 : i32
    %c0_i32_0 = arith.constant 0 : i32
    %c0_i32_1 = arith.constant 0 : i32
    return %c0_i32, %c0_i32_0 : i32, i32
  }
  func.func @transform_8(%arg0: i32) -> (i32, i32) {
    %c0_i32 = arith.constant 0 : i32
    %c0_i32_0 = arith.constant 0 : i32
    %c0_i32_1 = arith.constant 0 : i32
    return %c0_i32, %c0_i32_0 : i32, i32
  }
  func.func @transform_9(%arg0: i32) -> (i32, i32) {
    %c0_i32 = arith.constant 0 : i32
    %c0_i32_0 = arith.constant 0 : i32
    %c0_i32_1 = arith.constant 0 : i32
    return %c0_i32, %c0_i32_0 : i32, i32
  }
  func.func @transform_10(%arg0: i32) -> (i32, i32) {
    %c0_i32 = arith.constant 0 : i32
    %c0_i32_0 = arith.constant 0 : i32
    %c0_i32_1 = arith.constant 0 : i32
    return %c0_i32, %c0_i32_0 : i32, i32
  }
  func.func @transform_11(%arg0: i32) -> (i32, i32, i32) {
    %c0_i32 = arith.constant 0 : i32
    %c0_i32_0 = arith.constant 0 : i32
    %c0_i32_1 = arith.constant 0 : i32
    return %arg0, %c0_i32, %c0_i32_0 : i32, i32, i32
  }
}

</mosaic_0001>

<llo_original>
// kernel: tpu_custom_call.1
$region0: #{tpu_custom_call.1}
  #allocation0 [shape = 'u32[]', space=smem, size = 0x4, offset = 0x4, fixed_abs, tag = 'smem constant byte address 0x4 - core index']
  #allocation1 [shape = 'u32[144,128]{1,0:T(1,128)}', space=vmem, size = 0x12000, scoped, tag = 'internal scratch']
  %s0 = inlined_call_operand.hbm [shape: f32[2,8,256], index: 0, kind: input, shape index: {}]
  %s1 = inlined_call_operand.vmem [shape: f32[8,256], index: 1, kind: input, shape index: {}]
  %s2 = inlined_call_operand.hbm [shape: f32[8,256], index: 2, kind: input, shape index: {}]
  %s3 = inlined_call_operand.hbm [shape: f32[8,256], index: 3, kind: input, shape index: {}]
  %s4 = inlined_call_operand.vmem [shape: f32[8,256], index: 4, kind: input, shape index: {}]
  %s5 = inlined_call_operand.hbm [shape: f32[8,256], index: 5, kind: input, shape index: {}]
  %s6 = inlined_call_operand.hbm [shape: f32[8,256], index: 6, kind: input, shape index: {}]
  %s7 = inlined_call_operand.hbm [shape: f32[8,256], index: 7, kind: input, shape index: {}]
  %s8 = inlined_call_operand.vmem [shape: f32[8,1], index: 8, kind: input, shape index: {}]
  %s9 = inlined_call_operand.vmem [shape: bf16[8,8], index: 9, kind: input, shape index: {}]
  %s10 = inlined_call_operand.vmem [shape: f32[8,1], index: 10, kind: input, shape index: {}]
  %s11 = inlined_call_operand.hbm [shape: f32[2,8,256], index: 11, kind: output, shape index: {}]
  %s12 = sld [smem:[#allocation0]]
  $region101: #{tpu_custom_call.1} parent=0
    _
  %s14 = ssub.s32 1, %s12
  %s15 = scalar_select 0, %s14, %s12
  $region1: #{tpu_custom_call.1} parent=0
    #allocation2 [shape = 'u8[16384]{0}', space=vmem, size = 0x4000, scoped, tag = 'input window, operand 0']
    #allocation3 [shape = 's32[2]{0}', space=sflag, size = 0x8, scoped, tag = 'scoped memory for tpu_custom_call.1']
    #allocation4 [shape = 's32[2]{0}', space=sflag, size = 0x8, scoped, tag = 'scoped memory for tpu_custom_call.1']
    #allocation5 [shape = 'u8[8192]{0}', space=vmem, size = 0x2000, scoped, tag = 'input window, operand 2, single buffered']
    #allocation6 [shape = 's32[1]{0}', space=sflag, size = 0x4, scoped, tag = 'scoped memory for tpu_custom_call.1']
    #allocation7 [shape = 'u8[8192]{0}', space=vmem, size = 0x2000, scoped, tag = 'input window, operand 3, single buffered']
    #allocation8 [shape = 'u8[8192]{0}', space=vmem, size = 0x2000, scoped, tag = 'input window, operand 5, single buffered']
    #allocation9 [shape = 's32[1]{0}', space=sflag, size = 0x4, scoped, tag = 'scoped memory for tpu_custom_call.1']
    #allocation10 [shape = 'u8[8192]{0}', space=vmem, size = 0x2000, scoped, tag = 'input window, operand 6, single buffered']
    #allocation11 [shape = 'u8[8192]{0}', space=vmem, size = 0x2000, scoped, tag = 'input window, operand 7, single buffered']
    #allocation12 [shape = 's32[1]{0}', space=sflag, size = 0x4, scoped, tag = 'scoped memory for tpu_custom_call.1']
    #allocation13 [shape = 'u8[16384]{0}', space=vmem, size = 0x4000, scoped, tag = 'output window, operand 0']
    %16 = vsyncpa [#allocation3], 0
    %s17 = scalar_lea.sflag [#allocation3], 1
    %18 = vsyncpa %s17, 0
    %19 = vsyncpa [#allocation6], 0
    %20 = vsyncpa [#allocation9], 0
    %21 = vsyncpa [#allocation12], 0
    %22 = vsyncpa [#allocation4], 0
    %s23 = scalar_lea.sflag [#allocation4], 1
    %24 = vsyncpa %s23, 0
    loop: start=0, step=1, limit=4
    $region2: #{tpu_custom_call.1} parent=1 // loop_pre_header
      _
    $region3: #{tpu_custom_call.1} parent=1 // loop_header
      %s26 = sphi 0, %s30
      %p27 = scmp.ge.s32.totalorder %s26, 4
      %s36 = sphi 0, %s38
      %s39 = sphi 0, %s36
      %s40 = sphi 0, %s39
      %s56 = sphi 0, %s40
      %s60 = sphi 0, %s60
      %s62 = sphi 0, %s60
      %s63 = sphi 0, %s62
      %s77 = sphi 0, %s63
      %s81 = sphi 0, %s81
      %s83 = sphi 0, %s81
      %s84 = sphi 0, %s83
      %s98 = sphi 0, %s84
      %s102 = sphi 0, %s102
      %s104 = sphi 0, %s102
      %s105 = sphi 0, %s104
      %s119 = sphi 0, %s105
      %s123 = sphi 0, %s123
      %s125 = sphi 0, %s123
      %s126 = sphi 0, %s125
      %s140 = sphi 0, %s126
      %s144 = sphi 0, %s144
      %s146 = sphi 0, %s144
      %s147 = sphi 0, %s146
      %s161 = sphi 0, %s147
      %s165 = sphi 0, %s165
      %s167 = sphi 0, %s165
      %s168 = sphi 0, %s167
      %s182 = sphi 0, %s168
      %s186 = sphi 0, %s186
      %s188 = sphi 0, %s186
      %s189 = sphi 0, %s188
      %s203 = sphi 0, %s189
      %s207 = sphi 0, %s207
      %s209 = sphi 0, %s207
      %s210 = sphi 0, %s209
      %s224 = sphi 0, %s210
      %s228 = sphi 0, %s228
      %s230 = sphi 0, %s228
      %s231 = sphi 0, %s230
      %s245 = sphi 0, %s231
      %s249 = sphi 0, %s249
      %s251 = sphi 0, %s249
      %s252 = sphi 0, %s251
      %s266 = sphi 0, %s252
      %s272 = sphi 0, %s274
      %s275 = sphi 0, %s272
      %s276 = sphi 0, %s275
      %s292 = sphi 0, %s276
    $region4: #{tpu_custom_call.1} parent=1 // loop_header_branch
      %29 = sbr.rel (%p27) target = $region8
    $region5: #{tpu_custom_call.1} parent=1 // loop_body
      %s31 = ssub.s32 %s26, 1
      %s32 = ssub.s32 %s26, 2
      %s33 = sadd.s32 %s26, 1
      %s34 = ssub.s32 %s26, %s33
      %p35 = scmp.eq.s32.totalorder %s34, 0
      %s37 = sadd.s32 %s36, 1
      %s38 = scalar_select %p35, %s36, %s37
      %p41 = pneg %p35
      %p42 = scmp.eq.s32.totalorder %s26, 1
      %p43 = por %p41, %p42
      %p44 = scmp.ne.s32.totalorder %s36, %s39
      %p45 = scmp.eq.s32.totalorder %s26, 0
      %p46 = por %p44, %p45
      %p47 = scmp.ne.s32.totalorder %s36, %s39
      %p48 = scmp.eq.s32.totalorder %s31, 1
      %p49 = por %p47, %p48
      %p50 = scmp.ne.s32.totalorder %s39, %s40
      %p51 = scmp.eq.s32.totalorder %s31, 0
      %p52 = por %p50, %p51
      %p53 = scmp.ne.s32.totalorder %s39, %s40
      %p54 = scmp.eq.s32.totalorder %s32, 1
      %p55 = por %p53, %p54
      %p57 = scmp.ne.s32.totalorder %s40, %s56
      %p58 = scmp.eq.s32.totalorder %s32, 0
      %p59 = por %p57, %p58
      %s61 = sadd.s32 %s60, 1
      %p64 = scmp.eq.s32.totalorder %s26, 1
      %p65 = scmp.ne.s32.totalorder %s60, %s62
      %p66 = scmp.eq.s32.totalorder %s26, 0
      %p67 = por %p65, %p66
      %p68 = scmp.ne.s32.totalorder %s60, %s62
      %p69 = scmp.eq.s32.totalorder %s31, 1
      %p70 = por %p68, %p69
      %p71 = scmp.ne.s32.totalorder %s62, %s63
      %p72 = scmp.eq.s32.totalorder %s31, 0
      %p73 = por %p71, %p72
      %p74 = scmp.ne.s32.totalorder %s62, %s63
      %p75 = scmp.eq.s32.totalorder %s32, 1
      %p76 = por %p74, %p75
      %p78 = scmp.ne.s32.totalorder %s63, %s77
      %p79 = scmp.eq.s32.totalorder %s32, 0
      %p80 = por %p78, %p79
      %s82 = sadd.s32 %s81, 1
      %p85 = scmp.eq.s32.totalorder %s26, 1
      %p86 = scmp.ne.s32.totalorder %s81, %s83
      %p87 = scmp.eq.s32.totalorder %s26, 0
      %p88 = por %p86, %p87
      %p89 = scmp.ne.s32.totalorder %s81, %s83
      %p90 = scmp.eq.s32.totalorder %s31, 1
      %p91 = por %p89, %p90
      %p92 = scmp.ne.s32.totalorder %s83, %s84
      %p93 = scmp.eq.s32.totalorder %s31, 0
      %p94 = por %p92, %p93
      %p95 = scmp.ne.s32.totalorder %s83, %s84
      %p96 = scmp.eq.s32.totalorder %s32, 1
      %p97 = por %p95, %p96
      %p99 = scmp.ne.s32.totalorder %s84, %s98
      %p100 = scmp.eq.s32.totalorder %s32, 0
      %p101 = por %p99, %p100
      %s103 = sadd.s32 %s102, 1
      %p106 = scmp.eq.s32.totalorder %s26, 1
      %p107 = scmp.ne.s32.totalorder %s102, %s104
      %p108 = scmp.eq.s32.totalorder %s26, 0
      %p109 = por %p107, %p108
      %p110 = scmp.ne.s32.totalorder %s102, %s104
      %p111 = scmp.eq.s32.totalorder %s31, 1
      %p112 = por %p110, %p111
      %p113 = scmp.ne.s32.totalorder %s104, %s105
      %p114 = scmp.eq.s32.totalorder %s31, 0
      %p115 = por %p113, %p114
      %p116 = scmp.ne.s32.totalorder %s104, %s105
      %p117 = scmp.eq.s32.totalorder %s32, 1
      %p118 = por %p116, %p117
      %p120 = scmp.ne.s32.totalorder %s105, %s119
      %p121 = scmp.eq.s32.totalorder %s32, 0
      %p122 = por %p120, %p121
      %s124 = sadd.s32 %s123, 1
      %p127 = scmp.eq.s32.totalorder %s26, 1
      %p128 = scmp.ne.s32.totalorder %s123, %s125
      %p129 = scmp.eq.s32.totalorder %s26, 0
      %p130 = por %p128, %p129
      %p131 = scmp.ne.s32.totalorder %s123, %s125
      %p132 = scmp.eq.s32.totalorder %s31, 1
      %p133 = por %p131, %p132
      %p134 = scmp.ne.s32.totalorder %s125, %s126
      %p135 = scmp.eq.s32.totalorder %s31, 0
      %p136 = por %p134, %p135
      %p137 = scmp.ne.s32.totalorder %s125, %s126
      %p138 = scmp.eq.s32.totalorder %s32, 1
      %p139 = por %p137, %p138
      %p141 = scmp.ne.s32.totalorder %s126, %s140
      %p142 = scmp.eq.s32.totalorder %s32, 0
      %p143 = por %p141, %p142
      %s145 = sadd.s32 %s144, 1
      %p148 = scmp.eq.s32.totalorder %s26, 1
      %p149 = scmp.ne.s32.totalorder %s144, %s146
      %p150 = scmp.eq.s32.totalorder %s26, 0
      %p151 = por %p149, %p150
      %p152 = scmp.ne.s32.totalorder %s144, %s146
      %p153 = scmp.eq.s32.totalorder %s31, 1
      %p154 = por %p152, %p153
      %p155 = scmp.ne.s32.totalorder %s146, %s147
      %p156 = scmp.eq.s32.totalorder %s31, 0
      %p157 = por %p155, %p156
      %p158 = scmp.ne.s32.totalorder %s146, %s147
      %p159 = scmp.eq.s32.totalorder %s32, 1
      %p160 = por %p158, %p159
      %p162 = scmp.ne.s32.totalorder %s147, %s161
      %p163 = scmp.eq.s32.totalorder %s32, 0
      %p164 = por %p162, %p163
      %s166 = sadd.s32 %s165, 1
      %p169 = scmp.eq.s32.totalorder %s26, 1
      %p170 = scmp.ne.s32.totalorder %s165, %s167
      %p171 = scmp.eq.s32.totalorder %s26, 0
      %p172 = por %p170, %p171
      %p173 = scmp.ne.s32.totalorder %s165, %s167
      %p174 = scmp.eq.s32.totalorder %s31, 1
      %p175 = por %p173, %p174
      %p176 = scmp.ne.s32.totalorder %s167, %s168
      %p177 = scmp.eq.s32.totalorder %s31, 0
      %p178 = por %p176, %p177
      %p179 = scmp.ne.s32.totalorder %s167, %s168
      %p180 = scmp.eq.s32.totalorder %s32, 1
      %p181 = por %p179, %p180
      %p183 = scmp.ne.s32.totalorder %s168, %s182
      %p184 = scmp.eq.s32.totalorder %s32, 0
      %p185 = por %p183, %p184
      %s187 = sadd.s32 %s186, 1
      %p190 = scmp.eq.s32.totalorder %s26, 1
      %p191 = scmp.ne.s32.totalorder %s186, %s188
      %p192 = scmp.eq.s32.totalorder %s26, 0
      %p193 = por %p191, %p192
      %p194 = scmp.ne.s32.totalorder %s186, %s188
      %p195 = scmp.eq.s32.totalorder %s31, 1
      %p196 = por %p194, %p195
      %p197 = scmp.ne.s32.totalorder %s188, %s189
      %p198 = scmp.eq.s32.totalorder %s31, 0
      %p199 = por %p197, %p198
      %p200 = scmp.ne.s32.totalorder %s188, %s189
      %p201 = scmp.eq.s32.totalorder %s32, 1
      %p202 = por %p200, %p201
      %p204 = scmp.ne.s32.totalorder %s189, %s203
      %p205 = scmp.eq.s32.totalorder %s32, 0
      %p206 = por %p204, %p205
      %s208 = sadd.s32 %s207, 1
      %p211 = scmp.eq.s32.totalorder %s26, 1
      %p212 = scmp.ne.s32.totalorder %s207, %s209
      %p213 = scmp.eq.s32.totalorder %s26, 0
      %p214 = por %p212, %p213
      %p215 = scmp.ne.s32.totalorder %s207, %s209
      %p216 = scmp.eq.s32.totalorder %s31, 1
      %p217 = por %p215, %p216
      %p218 = scmp.ne.s32.totalorder %s209, %s210
      %p219 = scmp.eq.s32.totalorder %s31, 0
      %p220 = por %p218, %p219
      %p221 = scmp.ne.s32.totalorder %s209, %s210
      %p222 = scmp.eq.s32.totalorder %s32, 1
      %p223 = por %p221, %p222
      %p225 = scmp.ne.s32.totalorder %s210, %s224
      %p226 = scmp.eq.s32.totalorder %s32, 0
      %p227 = por %p225, %p226
      %s229 = sadd.s32 %s228, 1
      %p232 = scmp.eq.s32.totalorder %s26, 1
      %p233 = scmp.ne.s32.totalorder %s228, %s230
      %p234 = scmp.eq.s32.totalorder %s26, 0
      %p235 = por %p233, %p234
      %p236 = scmp.ne.s32.totalorder %s228, %s230
      %p237 = scmp.eq.s32.totalorder %s31, 1
      %p238 = por %p236, %p237
      %p239 = scmp.ne.s32.totalorder %s230, %s231
      %p240 = scmp.eq.s32.totalorder %s31, 0
      %p241 = por %p239, %p240
      %p242 = scmp.ne.s32.totalorder %s230, %s231
      %p243 = scmp.eq.s32.totalorder %s32, 1
      %p244 = por %p242, %p243
      %p246 = scmp.ne.s32.totalorder %s231, %s245
      %p247 = scmp.eq.s32.totalorder %s32, 0
      %p248 = por %p246, %p247
      %s250 = sadd.s32 %s249, 1
      %p253 = scmp.eq.s32.totalorder %s26, 1
      %p254 = scmp.ne.s32.totalorder %s249, %s251
      %p255 = scmp.eq.s32.totalorder %s26, 0
      %p256 = por %p254, %p255
      %p257 = scmp.ne.s32.totalorder %s249, %s251
      %p258 = scmp.eq.s32.totalorder %s31, 1
      %p259 = por %p257, %p258
      %p260 = scmp.ne.s32.totalorder %s251, %s252
      %p261 = scmp.eq.s32.totalorder %s31, 0
      %p262 = por %p260, %p261
      %p263 = scmp.ne.s32.totalorder %s251, %s252
      %p264 = scmp.eq.s32.totalorder %s32, 1
      %p265 = por %p263, %p264
      %p267 = scmp.ne.s32.totalorder %s252, %s266
      %p268 = scmp.eq.s32.totalorder %s32, 0
      %p269 = por %p267, %p268
      %s270 = ssub.s32 %s26, %s33
      %p271 = scmp.eq.s32.totalorder %s270, 0
      %s273 = sadd.s32 %s272, 1
      %s274 = scalar_select %p271, %s272, %s273
      %p277 = pneg %p271
      %p278 = scmp.eq.s32.totalorder %s26, 1
      %p279 = por %p277, %p278
      %p280 = scmp.ne.s32.totalorder %s272, %s275
      %p281 = scmp.eq.s32.totalorder %s26, 0
      %p282 = por %p280, %p281
      %p283 = scmp.ne.s32.totalorder %s272, %s275
      %p284 = scmp.eq.s32.totalorder %s31, 1
      %p285 = por %p283, %p284
      %p286 = scmp.ne.s32.totalorder %s275, %s276
      %p287 = scmp.eq.s32.totalorder %s31, 0
      %p288 = por %p286, %p287
      %p289 = scmp.ne.s32.totalorder %s275, %s276
      %p290 = scmp.eq.s32.totalorder %s32, 1
      %p291 = por %p289, %p290
      %p293 = scmp.ne.s32.totalorder %s276, %s292
      %p294 = scmp.eq.s32.totalorder %s32, 0
      %p295 = por %p293, %p294
      %p296 = scmp.le.s32.totalorder 1, %s26
      %p297 = scmp.lt.s32.totalorder %s26, 3
      %p298 = pnand %p296, %p297
      %p299 = pneg %p298
      // Predicated region
      $region9: #{tpu_custom_call.1} parent=5 // pred_check
        _
      $region10: #{tpu_custom_call.1} parent=5 // pred_check_branch
        %301 = sbr.rel (%p298) target = $region12
      $region11: #{tpu_custom_call.1} parent=5 // pred_region
        %s302 = ssub.s32 %s26, 1
        // Predicated region
        $region13: #{tpu_custom_call.1} parent=11 // pred_check
          %p303 = pneg %p73
        $region14: #{tpu_custom_call.1} parent=11 // pred_check_branch
          %305 = sbr.rel (%p303) target = $region16
        $region15: #{tpu_custom_call.1} parent=11 // pred_region
          _
        $region16: #{tpu_custom_call.1} parent=11 // pred_fallthru
          _
        // Predicated region
        $region17: #{tpu_custom_call.1} parent=11 // pred_check
          %p306 = pneg %p94
        $region18: #{tpu_custom_call.1} parent=11 // pred_check_branch
          %308 = sbr.rel (%p306) target = $region20
        $region19: #{tpu_custom_call.1} parent=11 // pred_region
          %s310 = ssub.s32 256, 256
          %311 = vsyncadd [#allocation6], %s310
          %s313 = sshll.u32 [#allocation5], 4
          %s314 = int_to_ptr.vmem [resolvable:$true] %s313
          %316 = dma.hbm_to_vmem [thread:$0]  %s2, 256, %s314, [#allocation6]
        $region20: #{tpu_custom_call.1} parent=11 // pred_fallthru
          _
        // Predicated region
        $region21: #{tpu_custom_call.1} parent=11 // pred_check
          %p317 = pneg %p115
        $region22: #{tpu_custom_call.1} parent=11 // pred_check_branch
          %319 = sbr.rel (%p317) target = $region24
        $region23: #{tpu_custom_call.1} parent=11 // pred_region
          %s321 = ssub.s32 256, 256
          %322 = vsyncadd [#allocation6], %s321
          %s324 = sshll.u32 [#allocation7], 4
          %s325 = int_to_ptr.vmem [resolvable:$true] %s324
          %327 = dma.hbm_to_vmem [thread:$0]  %s3, 256, %s325, [#allocation6]
        $region24: #{tpu_custom_call.1} parent=11 // pred_fallthru
          _
        // Predicated region
        $region25: #{tpu_custom_call.1} parent=11 // pred_check
          %p328 = pneg %p136
        $region26: #{tpu_custom_call.1} parent=11 // pred_check_branch
          %330 = sbr.rel (%p328) target = $region28
        $region27: #{tpu_custom_call.1} parent=11 // pred_region
          _
        $region28: #{tpu_custom_call.1} parent=11 // pred_fallthru
          _
        // Predicated region
        $region29: #{tpu_custom_call.1} parent=11 // pred_check
          %p331 = pneg %p157
        $region30: #{tpu_custom_call.1} parent=11 // pred_check_branch
          %333 = sbr.rel (%p331) target = $region32
        $region31: #{tpu_custom_call.1} parent=11 // pred_region
          %s335 = ssub.s32 256, 256
          %336 = vsyncadd [#allocation9], %s335
          %s338 = sshll.u32 [#allocation8], 4
          %s339 = int_to_ptr.vmem [resolvable:$true] %s338
          %341 = dma.hbm_to_vmem [thread:$0]  %s5, 256, %s339, [#allocation9]
        $region32: #{tpu_custom_call.1} parent=11 // pred_fallthru
          _
        // Predicated region
        $region33: #{tpu_custom_call.1} parent=11 // pred_check
          %p342 = pneg %p178
        $region34: #{tpu_custom_call.1} parent=11 // pred_check_branch
          %344 = sbr.rel (%p342) target = $region36
        $region35: #{tpu_custom_call.1} parent=11 // pred_region
          %s346 = ssub.s32 256, 256
          %347 = vsyncadd [#allocation9], %s346
          %s349 = sshll.u32 [#allocation10], 4
          %s350 = int_to_ptr.vmem [resolvable:$true] %s349
          %352 = dma.hbm_to_vmem [thread:$0]  %s6, 256, %s350, [#allocation9]
        $region36: #{tpu_custom_call.1} parent=11 // pred_fallthru
          _
        // Predicated region
        $region37: #{tpu_custom_call.1} parent=11 // pred_check
          %p353 = pneg %p199
        $region38: #{tpu_custom_call.1} parent=11 // pred_check_branch
          %355 = sbr.rel (%p353) target = $region40
        $region39: #{tpu_custom_call.1} parent=11 // pred_region
          %s357 = ssub.s32 256, 256
          %358 = vsyncadd [#allocation12], %s357
          %s360 = sshll.u32 [#allocation11], 4
          %s361 = int_to_ptr.vmem [resolvable:$true] %s360
          %363 = dma.hbm_to_vmem [thread:$0]  %s7, 256, %s361, [#allocation12]
        $region40: #{tpu_custom_call.1} parent=11 // pred_fallthru
          _
        // Predicated region
        $region41: #{tpu_custom_call.1} parent=11 // pred_check
          %p364 = pneg %p220
        $region42: #{tpu_custom_call.1} parent=11 // pred_check_branch
          %366 = sbr.rel (%p364) target = $region44
        $region43: #{tpu_custom_call.1} parent=11 // pred_region
          _
        $region44: #{tpu_custom_call.1} parent=11 // pred_fallthru
          _
        // Predicated region
        $region45: #{tpu_custom_call.1} parent=11 // pred_check
          %p367 = pneg %p241
        $region46: #{tpu_custom_call.1} parent=11 // pred_check_branch
          %369 = sbr.rel (%p367) target = $region48
        $region47: #{tpu_custom_call.1} parent=11 // pred_region
          _
        $region48: #{tpu_custom_call.1} parent=11 // pred_fallthru
          _
        // Predicated region
        $region49: #{tpu_custom_call.1} parent=11 // pred_check
          %p370 = pneg %p262
        $region50: #{tpu_custom_call.1} parent=11 // pred_check_branch
          %372 = sbr.rel (%p370) target = $region52
        $region51: #{tpu_custom_call.1} parent=11 // pred_region
          _
        $region52: #{tpu_custom_call.1} parent=11 // pred_fallthru
          _
      $region12: #{tpu_custom_call.1} parent=5 // pred_fallthru
        _
      %p373 = scmp.lt.s32.totalorder %s26, 2
      // Predicated region
      $region53: #{tpu_custom_call.1} parent=5 // pred_check
        %p374 = pneg %p373
      $region54: #{tpu_custom_call.1} parent=5 // pred_check_branch
        %376 = sbr.rel (%p374) target = $region56
      $region55: #{tpu_custom_call.1} parent=5 // pred_region
        // Predicated region
        $region57: #{tpu_custom_call.1} parent=55 // pred_check
          %p377 = pneg %p46
        $region58: #{tpu_custom_call.1} parent=55 // pred_check_branch
          %379 = sbr.rel (%p377) target = $region60
        $region59: #{tpu_custom_call.1} parent=55 // pred_region
          %s380 = sand.u32 %s36, 1
          %s381 = scalar_lea.sflag [#allocation3], %s380
          %s382 = sand.u32 %s36, 1
          %s383 = smul.addr %s382, 16
          %s384 = scalar_lea.vmem [#allocation2], %s383
          %s386 = ssub.s32 256, 256
          %387 = vsyncadd %s381, %s386
          %s388 = smul.addr %s26, 2
          %s389 = smul.addr %s388, 128
          %s390 = scalar_lea.hbm %s0, %s389
          %s392 = sshll.u32 %s384, 4
          %s393 = int_to_ptr.vmem [resolvable:$true] %s392
          %395 = dma.hbm_to_vmem [thread:$0]  %s390, 256, %s393, %s381
        $region60: #{tpu_custom_call.1} parent=55 // pred_fallthru
          _
      $region56: #{tpu_custom_call.1} parent=5 // pred_fallthru
        _
      %p396 = scmp.le.s32.totalorder 1, %s26
      %p397 = scmp.lt.s32.totalorder %s26, 3
      %p398 = pnand %p396, %p397
      %p399 = pneg %p398
      // Predicated region
      $region61: #{tpu_custom_call.1} parent=5 // pred_check
        _
      $region62: #{tpu_custom_call.1} parent=5 // pred_check_branch
        %401 = sbr.rel (%p398) target = $region64
      $region63: #{tpu_custom_call.1} parent=5 // pred_region
        %s402 = ssub.s32 %s26, 1
        %s403 = sand.u32 %s39, 1
        %s404 = scalar_lea.sflag [#allocation3], %s403
        %s405 = sand.u32 %s39, 1
        %s406 = smul.addr %s405, 16
        %s407 = scalar_lea.vmem [#allocation2], %s406
        // Predicated region
        $region65: #{tpu_custom_call.1} parent=63 // pred_check
          %p408 = pneg %p52
        $region66: #{tpu_custom_call.1} parent=63 // pred_check_branch
          %410 = sbr.rel (%p408) target = $region68
        $region67: #{tpu_custom_call.1} parent=63 // pred_region
          %411 = dma.done %s404, 256
        $region68: #{tpu_custom_call.1} parent=63 // pred_fallthru
          _
        // Predicated region
        $region69: #{tpu_custom_call.1} parent=63 // pred_check
          %p412 = pneg %p94
        $region70: #{tpu_custom_call.1} parent=63 // pred_check_branch
          %414 = sbr.rel (%p412) target = $region72
        $region71: #{tpu_custom_call.1} parent=63 // pred_region
          %415 = dma.done [#allocation6], 256
        $region72: #{tpu_custom_call.1} parent=63 // pred_fallthru
          _
        // Predicated region
        $region73: #{tpu_custom_call.1} parent=63 // pred_check
          %p416 = pneg %p115
        $region74: #{tpu_custom_call.1} parent=63 // pred_check_branch
          %418 = sbr.rel (%p416) target = $region76
        $region75: #{tpu_custom_call.1} parent=63 // pred_region
          %419 = dma.done [#allocation6], 256
        $region76: #{tpu_custom_call.1} parent=63 // pred_fallthru
          _
        // Predicated region
        $region77: #{tpu_custom_call.1} parent=63 // pred_check
          %p420 = pneg %p157
        $region78: #{tpu_custom_call.1} parent=63 // pred_check_branch
          %422 = sbr.rel (%p420) target = $region80
        $region79: #{tpu_custom_call.1} parent=63 // pred_region
          %423 = dma.done [#allocation9], 256
        $region80: #{tpu_custom_call.1} parent=63 // pred_fallthru
          _
        // Predicated region
        $region81: #{tpu_custom_call.1} parent=63 // pred_check
          %p424 = pneg %p178
        $region82: #{tpu_custom_call.1} parent=63 // pred_check_branch
          %426 = sbr.rel (%p424) target = $region84
        $region83: #{tpu_custom_call.1} parent=63 // pred_region
          %427 = dma.done [#allocation9], 256
        $region84: #{tpu_custom_call.1} parent=63 // pred_fallthru
          _
        // Predicated region
        $region85: #{tpu_custom_call.1} parent=63 // pred_check
          %p428 = pneg %p199
        $region86: #{tpu_custom_call.1} parent=63 // pred_check_branch
          %430 = sbr.rel (%p428) target = $region88
        $region87: #{tpu_custom_call.1} parent=63 // pred_region
          %431 = dma.done [#allocation12], 256
        $region88: #{tpu_custom_call.1} parent=63 // pred_fallthru
          _
        %s432 = sand.u32 %s39, 1
        %s433 = scalar_lea.sflag [#allocation3], %s432
        %s434 = sand.u32 %s39, 1
        %s435 = smul.addr %s434, 16
        %s436 = scalar_lea.vmem [#allocation2], %s435
        %p437 = pneg %p52
        %p438 = pneg %p49
        %p439 = pneg %p73
        %p440 = pneg %p70
        %p441 = pneg %p94
        %p442 = pneg %p91
        %p443 = pneg %p115
        %p444 = pneg %p112
        %p445 = pneg %p136
        %p446 = pneg %p133
        %p447 = pneg %p157
        %p448 = pneg %p154
        %p449 = pneg %p178
        %p450 = pneg %p175
        %p451 = pneg %p199
        %p452 = pneg %p196
        %p453 = pneg %p220
        %p454 = pneg %p217
        %p455 = pneg %p241
        %p456 = pneg %p238
        %p457 = pneg %p262
        %p458 = pneg %p259
        %p459 = pneg %p288
        %p460 = pneg %p285
        %s461 = sand.u32 %s275, 1
        %s462 = scalar_lea.sflag [#allocation4], %s461
        %s463 = sand.u32 %s275, 1
        %s464 = smul.addr %s463, 16
        %s465 = scalar_lea.vmem [#allocation13], %s464
        %v467 = vld [vmem:[%s407] sm:$0xff]
        %v468 = vld [vmem:[%s407 + $0x8] sm:$0xff]
        %469 = vrot.lane.b32.xlu0 %v467, 16
        %v470 = vpop.permute.xlu0 %469
        %471 = vrot.lane.b32.xlu0 %v468, 16
        %v472 = vpop.permute.xlu0 %471
        %v473 = vlaneseq
        %v474 = vand.u32 %v473, 127
        %vm475 = vcmp.lt.s32.totalorder %v474, 16
        %v476 = vsel %vm475, %v470, %v472
        %v477 = vsel %vm475, %v472, %v470
        %478 = vrot.lane.b32.xlu0 %v467, 112
        %v479 = vpop.permute.xlu0 %478
        %480 = vrot.lane.b32.xlu0 %v468, 112
        %v481 = vpop.permute.xlu0 %480
        %vm482 = vcmp.lt.s32.totalorder %v474, 112
        %v483 = vsel %vm482, %v479, %v481
        %v484 = vsel %vm482, %v481, %v479
        %v485 = vld [vmem:[%s1] sm:$0xff]
        %v486 = vld [vmem:[%s1 + $0x8] sm:$0xff]
        %v487 = vmul.f32 %v477, %v485
        %v488 = vmul.f32 %v476, %v486
        %v489 = vld [vmem:[#allocation5] sm:$0xff]
        %v490 = vld [vmem:[#allocation5 + $0x8] sm:$0xff]
        %v491 = vmul.f32 %v467, %v489
        %v492 = vmul.f32 %v468, %v490
        %v493 = vadd.f32 %v487, %v491
        %v494 = vadd.f32 %v488, %v492
        %v495 = vld [vmem:[#allocation7] sm:$0xff]
        %v496 = vld [vmem:[#allocation7 + $0x8] sm:$0xff]
        %v497 = vmul.f32 %v483, %v495
        %v498 = vmul.f32 %v484, %v496
        %v499 = vadd.f32 %v493, %v497
        %v500 = vadd.f32 %v494, %v498
        %v501 = vld [vmem:[%s4] sm:$0xff]
        %v502 = vld [vmem:[%s4 + $0x8] sm:$0xff]
        %v503 = vadd.f32 %v499, %v501
        %v504 = vadd.f32 %v500, %v502
        %505 = vrot.lane.b32.xlu0 %v503, 16
        %v506 = vpop.permute.xlu0 %505
        %507 = vrot.lane.b32.xlu0 %v504, 16
        %v508 = vpop.permute.xlu0 %507
        %v509 = vsel %vm475, %v506, %v508
        %v510 = vsel %vm475, %v508, %v506
        %v511 = vadd.f32 %v503, %v510
        %v512 = vadd.f32 %v504, %v509
        %513 = vrot.lane.b32.xlu0 %v511, 32
        %v514 = vpop.permute.xlu0 %513
        %515 = vrot.lane.b32.xlu0 %v512, 32
        %v516 = vpop.permute.xlu0 %515
        %vm517 = vcmp.lt.s32.totalorder %v474, 32
        %v518 = vsel %vm517, %v514, %v516
        %v519 = vsel %vm517, %v516, %v514
        %v520 = vadd.f32 %v511, %v519
        %v521 = vadd.f32 %v512, %v518
        %522 = vrot.lane.b32.xlu0 %v520, 64
        %v523 = vpop.permute.xlu0 %522
        %524 = vrot.lane.b32.xlu0 %v521, 64
        %v525 = vpop.permute.xlu0 %524
        %vm526 = vcmp.lt.s32.totalorder %v474, 64
        %v527 = vsel %vm526, %v523, %v525
        %v528 = vsel %vm526, %v525, %v523
        %v529 = vadd.f32 %v520, %v528
        %v530 = vadd.f32 %v521, %v527
        %v531 = vadd.f32 %v529, %v530
        %v532 = vmul.f32 %v531, 0.0625
        %533 = vrot.lane.b32.xlu0 %v532, 1
        %v534 = vpop.permute.xlu0 %533
        %535 = vrot.lane.b32.xlu0 %v532, 127
        %v536 = vpop.permute.xlu0 %535
        %v537 = vld [vmem:[#allocation8] sm:$0xff]
        %v538 = vld [vmem:[#allocation8 + $0x8] sm:$0xff]
        %v539 = vmul.f32 %v534, %v537
        %v540 = vmul.f32 %v534, %v538
        %v541 = vld [vmem:[#allocation10] sm:$0xff]
        %v542 = vld [vmem:[#allocation10 + $0x8] sm:$0xff]
        %v543 = vmul.f32 %v532, %v541
        %v544 = vmul.f32 %v532, %v542
        %v545 = vadd.f32 %v539, %v543
        %v546 = vadd.f32 %v540, %v544
        %v547 = vld [vmem:[#allocation11] sm:$0xff]
        %v548 = vld [vmem:[#allocation11 + $0x8] sm:$0xff]
        %v549 = vmul.f32 %v536, %v547
        %v550 = vmul.f32 %v536, %v548
        %v551 = vadd.f32 %v545, %v549
        %v552 = vadd.f32 %v546, %v550
        %v553 = vld [vmem:[%s8] sm:$0xff]
        %555 = vset.pattern.permute.xlu0 0
        %556 = vperm.xlu0 %555, %v553
        %v557 = vpop.permute.xlu0 %556
        %v559 = vadd.f32 %v551, %v557
        %v560 = vadd.f32 %v552, %v557
        %v561 = vxor.u32 %v559, 2147483648
        %v562 = vxor.u32 %v560, 2147483648
        %v563 = vmul.f32 %v561, 1.442695
        %v564 = vpow.pop %v563
        %v565 = vmul.f32 %v562, 1.442695
        %v566 = vpow.pop %v565
        %v567 = vadd.f32 %v564, 1.0
        %v568 = vadd.f32 %v566, 1.0
        %v569 = vrcp.pop %v567
        %v570 = vmul.f32 1.0, %v569
        %v571 = vrcp.pop %v568
        %v572 = vmul.f32 1.0, %v571
        %v573 = vmul.f32 %v559, %v570
        %v574 = vmul.f32 %v560, %v572
        %v575 = vld [vmem:[%s9] sm:$0xf]
        %v576 = vpack.c.bf16 %v573, %v573
        %v577 = vpack.c.bf16 %v574, %v574
        %v578 = vld [vmem:[%s10] sm:$0xff]
        %580 = vset.pattern.permute.xlu0 0
        %581 = vperm.xlu0 %580, %v578
        %v582 = vpop.permute.xlu0 %581
        %vm584 = vcmask 64512
        %v586 = vsel %vm584, %v575, 0
        %vm588 = vcmask 1043456
        %v590 = vsel %vm588, %v576, 0
        %v593 = vsel %vm588, %v577, 0
        %595 = vmatprep.subr.bf16.mxu0 %v593
        %596 = vmatpush1.bf16.msra.mxu0 %v590
        %597 = vmatprep.subr.bf16.mxu0 0
        %598 = vmatpush1.bf16.msra.mxu0 0
        %599 = vmatprep.subr.bf16.mxu0 0
        %600 = vmatpush1.bf16.msra.mxu0 0
        %601 = vmatprep.subr.bf16.mxu0 0
        %602 = vmatpush1.bf16.msra.mxu0 0
        %603 = vmatprep.subr.bf16.mxu0 0
        %604 = vmatpush1.bf16.msra.mxu0 0
        %605 = vmatprep.subr.bf16.mxu0 0
        %606 = vmatpush1.bf16.msra.mxu0 0
        %607 = vmatprep.subr.bf16.mxu0 0
        %608 = vmatpush1.bf16.msra.mxu0 0
        %609 = vmatprep.subr.bf16.mxu0 0
        %610 = vmatpush1.bf16.msra.mxu0 0
        %611 = vmatprep.subr.bf16.mxu0 0
        %612 = vmatpush1.bf16.msra.mxu0 0
        %613 = vmatprep.subr.bf16.mxu0 0
        %614 = vmatpush1.bf16.msra.mxu0 0
        %615 = vmatprep.subr.bf16.mxu0 0
        %616 = vmatpush1.bf16.msra.mxu0 0
        %617 = vmatprep.subr.bf16.mxu0 0
        %618 = vmatpush1.bf16.msra.mxu0 0
        %619 = vmatprep.subr.bf16.mxu0 0
        %620 = vmatpush1.bf16.msra.mxu0 0
        %621 = vmatprep.subr.bf16.mxu0 0
        %622 = vmatpush1.bf16.msra.mxu0 0
        %623 = vmatprep.subr.bf16.mxu0 0
        %624 = vmatpush1.bf16.msra.mxu0 0
        %625 = vmatprep.subr.bf16.mxu0 0
        %626 = vmatpush1.bf16.msra.mxu0 0
        %627 = vmatprep.mubr.bf16.mxu0 0
        %628 = vmatmul.mubr.bf16.gmra.mrb[0].mxu0 %v586
        %v629 = vpop.f32.mrb[0].mxu0
        %v630 = vadd.f32 %v582, %v629
        %v631 = vpop.f32.mrb[0].mxu0
        %v632 = vadd.f32 %v582, %v631
        %v633 = vpop.f32.mrb[0].mxu0
        %v634 = vpop.f32.mrb[0].mxu0
        %635 = vdwg.mxu0
        %v636 = vadd.f32 %v467, %v503
        %v637 = vadd.f32 %v468, %v504
        %v638 = vadd.f32 %v636, %v630
        %v639 = vadd.f32 %v637, %v632
        %v640 = vmax.f32 %v638, 0.0
        %v641 = vmax.f32 %v639, 0.0
        %642 = vst [vmem:[%s465] sm:$0xff] %v640
        %643 = vst [vmem:[%s465 + $0x8] sm:$0xff] %v641
        %s644 = sand.u32 %s275, 1
        %s645 = scalar_lea.sflag [#allocation4], %s644
        %s646 = sand.u32 %s275, 1
        %s647 = smul.addr %s646, 16
        %s648 = scalar_lea.vmem [#allocation13], %s647
        // Predicated region
        $region89: #{tpu_custom_call.1} parent=63 // pred_check
          %p649 = pneg %p285
        $region90: #{tpu_custom_call.1} parent=63 // pred_check_branch
          %651 = sbr.rel (%p649) target = $region92
        $region91: #{tpu_custom_call.1} parent=63 // pred_region
          %s653 = ssub.s32 256, 256
          %654 = vsyncadd %s645, %s653
          %s655 = smul.addr %s31, 2
          %s656 = smul.addr %s655, 128
          %s657 = scalar_lea.hbm %s11, %s656
          %s659 = sshll.u32 %s648, 4
          %s660 = int_to_ptr.vmem [resolvable:$true] %s659
          %662 = dma.vmem_to_hbm [thread:$0]  %s660, 256, %s657, %s645
        $region92: #{tpu_custom_call.1} parent=63 // pred_fallthru
          _
      $region64: #{tpu_custom_call.1} parent=5 // pred_fallthru
        _
      %p663 = scmp.le.s32.totalorder 2, %s26
      // Predicated region
      $region93: #{tpu_custom_call.1} parent=5 // pred_check
        %p664 = pneg %p663
      $region94: #{tpu_custom_call.1} parent=5 // pred_check_branch
        %666 = sbr.rel (%p664) target = $region96
      $region95: #{tpu_custom_call.1} parent=5 // pred_region
        %s667 = ssub.s32 %s26, 2
        // Predicated region
        $region97: #{tpu_custom_call.1} parent=95 // pred_check
          %p668 = pneg %p291
        $region98: #{tpu_custom_call.1} parent=95 // pred_check_branch
          %670 = sbr.rel (%p668) target = $region100
        $region99: #{tpu_custom_call.1} parent=95 // pred_region
          %s671 = sand.u32 %s276, 1
          %s672 = scalar_lea.sflag [#allocation4], %s671
          %s673 = sand.u32 %s276, 1
          %s674 = smul.addr %s673, 16
          %s675 = scalar_lea.vmem [#allocation13], %s674
          %676 = dma.done %s672, 256
        $region100: #{tpu_custom_call.1} parent=95 // pred_fallthru
          _
      $region96: #{tpu_custom_call.1} parent=5 // pred_fallthru
        _
    $region6: #{tpu_custom_call.1} parent=1 // loop_footer
      %s30 = sadd.s32 1, %s26
    $region7: #{tpu_custom_call.1} parent=1 // loop_footer_branch
      %25 = sbr.rel target = $region3
    $region8: #{tpu_custom_call.1} parent=1 // loop_exit
      _
    %677 = vsyncpa [#allocation3], 1
    %s678 = scalar_lea.sflag [#allocation3], 1
    %679 = vsyncpa %s678, 1
    %680 = vsyncpa [#allocation6], 1
    %681 = vsyncpa [#allocation9], 1
    %682 = vsyncpa [#allocation12], 1
    %683 = vsyncpa [#allocation4], 1
    %s684 = scalar_lea.sflag [#allocation4], 1
    %685 = vsyncpa %s684, 1

// kernel: tpu_custom_call.1
$region0: #{tpu_custom_call.1}
  #allocation0 [shape = 'u32[]', space=smem, size = 0x4, offset = 0x4, fixed_abs, tag = 'smem constant byte address 0x4 - core index']
  #allocation1 [shape = 'u32[144,128]{1,0:T(1,128)}', space=vmem, size = 0x12000, scoped, tag = 'internal scratch']
  %s0 = inlined_call_operand.hbm [shape: f32[2,8,256], index: 0, kind: input, shape index: {}]
  %s1 = inlined_call_operand.vmem [shape: f32[8,256], index: 1, kind: input, shape index: {}]
  %s2 = inlined_call_operand.hbm [shape: f32[8,256], index: 2, kind: input, shape index: {}]
  %s3 = inlined_call_operand.hbm [shape: f32[8,256], index: 3, kind: input, shape index: {}]
  %s4 = inlined_call_operand.vmem [shape: f32[8,256], index: 4, kind: input, shape index: {}]
  %s5 = inlined_call_operand.hbm [shape: f32[8,256], index: 5, kind: input, shape index: {}]
  %s6 = inlined_call_operand.hbm [shape: f32[8,256], index: 6, kind: input, shape index: {}]
  %s7 = inlined_call_operand.hbm [shape: f32[8,256], index: 7, kind: input, shape index: {}]
  %s8 = inlined_call_operand.vmem [shape: f32[8,1], index: 8, kind: input, shape index: {}]
  %s9 = inlined_call_operand.vmem [shape: bf16[8,8], index: 9, kind: input, shape index: {}]
  %s10 = inlined_call_operand.vmem [shape: f32[8,1], index: 10, kind: input, shape index: {}]
  %s11 = inlined_call_operand.hbm [shape: f32[2,8,256], index: 11, kind: output, shape index: {}]
  %s12 = sld [smem:[#allocation0]]
  $region101: #{tpu_custom_call.1} parent=0
    _
  %s14 = ssub.s32 1, %s12
  %s15 = scalar_select 0, %s14, %s12
  $region1: #{tpu_custom_call.1} parent=0
    #allocation2 [shape = 'u8[16384]{0}', space=vmem, size = 0x4000, scoped, tag = 'input window, operand 0']
    #allocation3 [shape = 's32[2]{0}', space=sflag, size = 0x8, scoped, tag = 'scoped memory for tpu_custom_call.1']
    #allocation4 [shape = 's32[2]{0}', space=sflag, size = 0x8, scoped, tag = 'scoped memory for tpu_custom_call.1']
    #allocation5 [shape = 'u8[8192]{0}', space=vmem, size = 0x2000, scoped, tag = 'input window, operand 2, single buffered']
    #allocation6 [shape = 's32[1]{0}', space=sflag, size = 0x4, scoped, tag = 'scoped memory for tpu_custom_call.1']
    #allocation7 [shape = 'u8[8192]{0}', space=vmem, size = 0x2000, scoped, tag = 'input window, operand 3, single buffered']
    #allocation8 [shape = 'u8[8192]{0}', space=vmem, size = 0x2000, scoped, tag = 'input window, operand 5, single buffered']
    #allocation9 [shape = 's32[1]{0}', space=sflag, size = 0x4, scoped, tag = 'scoped memory for tpu_custom_call.1']
    #allocation10 [shape = 'u8[8192]{0}', space=vmem, size = 0x2000, scoped, tag = 'input window, operand 6, single buffered']
    #allocation11 [shape = 'u8[8192]{0}', space=vmem, size = 0x2000, scoped, tag = 'input window, operand 7, single buffered']
    #allocation12 [shape = 's32[1]{0}', space=sflag, size = 0x4, scoped, tag = 'scoped memory for tpu_custom_call.1']
    #allocation13 [shape = 'u8[16384]{0}', space=vmem, size = 0x4000, scoped, tag = 'output window, operand 0']
    %16 = vsyncpa [#allocation3], 0
    %s17 = scalar_lea.sflag [#allocation3], 1
    %18 = vsyncpa %s17, 0
    %19 = vsyncpa [#allocation6], 0
    %20 = vsyncpa [#allocation9], 0
    %21 = vsyncpa [#allocation12], 0
    %22 = vsyncpa [#allocation4], 0
    %s23 = scalar_lea.sflag [#allocation4], 1
    %24 = vsyncpa %s23, 0
    loop: start=0, step=1, limit=4
    $region2: #{tpu_custom_call.1} parent=1 // loop_pre_header
      _
    $region3: #{tpu_custom_call.1} parent=1 // loop_header
      %s26 = sphi 0, %s30
      %p27 = scmp.ge.s32.totalorder %s26, 4
      %s36 = sphi 0, %s38
      %s39 = sphi 0, %s36
      %s40 = sphi 0, %s39
      %s56 = sphi 0, %s40
      %s60 = sphi 0, %s60
      %s62 = sphi 0, %s60
      %s63 = sphi 0, %s62
      %s77 = sphi 0, %s63
      %s81 = sphi 0, %s81
      %s83 = sphi 0, %s81
      %s84 = sphi 0, %s83
      %s98 = sphi 0, %s84
      %s102 = sphi 0, %s102
      %s104 = sphi 0, %s102
      %s105 = sphi 0, %s104
      %s119 = sphi 0, %s105
      %s123 = sphi 0, %s123
      %s125 = sphi 0, %s123
      %s126 = sphi 0, %s125
      %s140 = sphi 0, %s126
      %s144 = sphi 0, %s144
      %s146 = sphi 0, %s144
      %s147 = sphi 0, %s146
      %s161 = sphi 0, %s147
      %s165 = sphi 0, %s165
      %s167 = sphi 0, %s165
      %s168 = sphi 0, %s167
      %s182 = sphi 0, %s168
      %s186 = sphi 0, %s186
      %s188 = sphi 0, %s186
      %s189 = sphi 0, %s188
      %s203 = sphi 0, %s189
      %s207 = sphi 0, %s207
      %s209 = sphi 0, %s207
      %s210 = sphi 0, %s209
      %s224 = sphi 0, %s210
      %s228 = sphi 0, %s228
      %s230 = sphi 0, %s228
      %s231 = sphi 0, %s230
      %s245 = sphi 0, %s231
      %s249 = sphi 0, %s249
      %s251 = sphi 0, %s249
      %s252 = sphi 0, %s251
      %s266 = sphi 0, %s252
      %s272 = sphi 0, %s274
      %s275 = sphi 0, %s272
      %s276 = sphi 0, %s275
      %s292 = sphi 0, %s276
    $region4: #{tpu_custom_call.1} parent=1 // loop_header_branch
      %29 = sbr.rel (%p27) target = $region8
    $region5: #{tpu_custom_call.1} parent=1 // loop_body
      %s31 = ssub.s32 %s26, 1
      %s32 = ssub.s32 %s26, 2
      %s33 = sadd.s32 %s26, 1
      %s34 = ssub.s32 %s26, %s33
      %p35 = scmp.eq.s32.totalorder %s34, 0
      %s37 = sadd.s32 %s36, 1
      %s38 = scalar_select %p35, %s36, %s37
      %p41 = pneg %p35
      %p42 = scmp.eq.s32.totalorder %s26, 1
      %p43 = por %p41, %p42
      %p44 = scmp.ne.s32.totalorder %s36, %s39
      %p45 = scmp.eq.s32.totalorder %s26, 0
      %p46 = por %p44, %p45
      %p47 = scmp.ne.s32.totalorder %s36, %s39
      %p48 = scmp.eq.s32.totalorder %s31, 1
      %p49 = por %p47, %p48
      %p50 = scmp.ne.s32.totalorder %s39, %s40
      %p51 = scmp.eq.s32.totalorder %s31, 0
      %p52 = por %p50, %p51
      %p53 = scmp.ne.s32.totalorder %s39, %s40
      %p54 = scmp.eq.s32.totalorder %s32, 1
      %p55 = por %p53, %p54
      %p57 = scmp.ne.s32.totalorder %s40, %s56
      %p58 = scmp.eq.s32.totalorder %s32, 0
      %p59 = por %p57, %p58
      %s61 = sadd.s32 %s60, 1
      %p64 = scmp.eq.s32.totalorder %s26, 1
      %p65 = scmp.ne.s32.totalorder %s60, %s62
      %p66 = scmp.eq.s32.totalorder %s26, 0
      %p67 = por %p65, %p66
      %p68 = scmp.ne.s32.totalorder %s60, %s62
      %p69 = scmp.eq.s32.totalorder %s31, 1
      %p70 = por %p68, %p69
      %p71 = scmp.ne.s32.totalorder %s62, %s63
      %p72 = scmp.eq.s32.totalorder %s31, 0
      %p73 = por %p71, %p72
      %p74 = scmp.ne.s32.totalorder %s62, %s63
      %p75 = scmp.eq.s32.totalorder %s32, 1
      %p76 = por %p74, %p75
      %p78 = scmp.ne.s32.totalorder %s63, %s77
      %p79 = scmp.eq.s32.totalorder %s32, 0
      %p80 = por %p78, %p79
      %s82 = sadd.s32 %s81, 1
      %p85 = scmp.eq.s32.totalorder %s26, 1
      %p86 = scmp.ne.s32.totalorder %s81, %s83
      %p87 = scmp.eq.s32.totalorder %s26, 0
      %p88 = por %p86, %p87
      %p89 = scmp.ne.s32.totalorder %s81, %s83
      %p90 = scmp.eq.s32.totalorder %s31, 1
      %p91 = por %p89, %p90
      %p92 = scmp.ne.s32.totalorder %s83, %s84
      %p93 = scmp.eq.s32.totalorder %s31, 0
      %p94 = por %p92, %p93
      %p95 = scmp.ne.s32.totalorder %s83, %s84
      %p96 = scmp.eq.s32.totalorder %s32, 1
      %p97 = por %p95, %p96
      %p99 = scmp.ne.s32.totalorder %s84, %s98
      %p100 = scmp.eq.s32.totalorder %s32, 0
      %p101 = por %p99, %p100
      %s103 = sadd.s32 %s102, 1
      %p106 = scmp.eq.s32.totalorder %s26, 1
      %p107 = scmp.ne.s32.totalorder %s102, %s104
      %p108 = scmp.eq.s32.totalorder %s26, 0
      %p109 = por %p107, %p108
      %p110 = scmp.ne.s32.totalorder %s102, %s104
      %p111 = scmp.eq.s32.totalorder %s31, 1
      %p112 = por %p110, %p111
      %p113 = scmp.ne.s32.totalorder %s104, %s105
      %p114 = scmp.eq.s32.totalorder %s31, 0
      %p115 = por %p113, %p114
      %p116 = scmp.ne.s32.totalorder %s104, %s105
      %p117 = scmp.eq.s32.totalorder %s32, 1
      %p118 = por %p116, %p117
      %p120 = scmp.ne.s32.totalorder %s105, %s119
      %p121 = scmp.eq.s32.totalorder %s32, 0
      %p122 = por %p120, %p121
      %s124 = sadd.s32 %s123, 1
      %p127 = scmp.eq.s32.totalorder %s26, 1
      %p128 = scmp.ne.s32.totalorder %s123, %s125
      %p129 = scmp.eq.s32.totalorder %s26, 0
      %p130 = por %p128, %p129
      %p131 = scmp.ne.s32.totalorder %s123, %s125
      %p132 = scmp.eq.s32.totalorder %s31, 1
      %p133 = por %p131, %p132
      %p134 = scmp.ne.s32.totalorder %s125, %s126
      %p135 = scmp.eq.s32.totalorder %s31, 0
      %p136 = por %p134, %p135
      %p137 = scmp.ne.s32.totalorder %s125, %s126
      %p138 = scmp.eq.s32.totalorder %s32, 1
      %p139 = por %p137, %p138
      %p141 = scmp.ne.s32.totalorder %s126, %s140
      %p142 = scmp.eq.s32.totalorder %s32, 0
      %p143 = por %p141, %p142
      %s145 = sadd.s32 %s144, 1
      %p148 = scmp.eq.s32.totalorder %s26, 1
      %p149 = scmp.ne.s32.totalorder %s144, %s146
      %p150 = scmp.eq.s32.totalorder %s26, 0
      %p151 = por %p149, %p150
      %p152 = scmp.ne.s32.totalorder %s144, %s146
      %p153 = scmp.eq.s32.totalorder %s31, 1
      %p154 = por %p152, %p153
      %p155 = scmp.ne.s32.totalorder %s146, %s147
      %p156 = scmp.eq.s32.totalorder %s31, 0
      %p157 = por %p155, %p156
      %p158 = scmp.ne.s32.totalorder %s146, %s147
      %p159 = scmp.eq.s32.totalorder %s32, 1
      %p160 = por %p158, %p159
      %p162 = scmp.ne.s32.totalorder %s147, %s161
      %p163 = scmp.eq.s32.totalorder %s32, 0
      %p164 = por %p162, %p163
      %s166 = sadd.s32 %s165, 1
      %p169 = scmp.eq.s32.totalorder %s26, 1
      %p170 = scmp.ne.s32.totalorder %s165, %s167
      %p171 = scmp.eq.s32.totalorder %s26, 0
      %p172 = por %p170, %p171
      %p173 = scmp.ne.s32.totalorder %s165, %s167
      %p174 = scmp.eq.s32.totalorder %s31, 1
      %p175 = por %p173, %p174
      %p176 = scmp.ne.s32.totalorder %s167, %s168
      %p177 = scmp.eq.s32.totalorder %s31, 0
      %p178 = por %p176, %p177
      %p179 = scmp.ne.s32.totalorder %s167, %s168
      %p180 = scmp.eq.s32.totalorder %s32, 1
      %p181 = por %p179, %p180
      %p183 = scmp.ne.s32.totalorder %s168, %s182
      %p184 = scmp.eq.s32.totalorder %s32, 0
      %p185 = por %p183, %p184
      %s187 = sadd.s32 %s186, 1
      %p190 = scmp.eq.s32.totalorder %s26, 1
      %p191 = scmp.ne.s32.totalorder %s186, %s188
      %p192 = scmp.eq.s32.totalorder %s26, 0
      %p193 = por %p191, %p192
      %p194 = scmp.ne.s32.totalorder %s186, %s188
      %p195 = scmp.eq.s32.totalorder %s31, 1
      %p196 = por %p194, %p195
      %p197 = scmp.ne.s32.totalorder %s188, %s189
      %p198 = scmp.eq.s32.totalorder %s31, 0
      %p199 = por %p197, %p198
      %p200 = scmp.ne.s32.totalorder %s188, %s189
      %p201 = scmp.eq.s32.totalorder %s32, 1
      %p202 = por %p200, %p201
      %p204 = scmp.ne.s32.totalorder %s189, %s203
      %p205 = scmp.eq.s32.totalorder %s32, 0
      %p206 = por %p204, %p205
      %s208 = sadd.s32 %s207, 1
      %p211 = scmp.eq.s32.totalorder %s26, 1
      %p212 = scmp.ne.s32.totalorder %s207, %s209
      %p213 = scmp.eq.s32.totalorder %s26, 0
      %p214 = por %p212, %p213
      %p215 = scmp.ne.s32.totalorder %s207, %s209
      %p216 = scmp.eq.s32.totalorder %s31, 1
      %p217 = por %p215, %p216
      %p218 = scmp.ne.s32.totalorder %s209, %s210
      %p219 = scmp.eq.s32.totalorder %s31, 0
      %p220 = por %p218, %p219
      %p221 = scmp.ne.s32.totalorder %s209, %s210
      %p222 = scmp.eq.s32.totalorder %s32, 1
      %p223 = por %p221, %p222
      %p225 = scmp.ne.s32.totalorder %s210, %s224
      %p226 = scmp.eq.s32.totalorder %s32, 0
      %p227 = por %p225, %p226
      %s229 = sadd.s32 %s228, 1
      %p232 = scmp.eq.s32.totalorder %s26, 1
      %p233 = scmp.ne.s32.totalorder %s228, %s230
      %p234 = scmp.eq.s32.totalorder %s26, 0
      %p235 = por %p233, %p234
      %p236 = scmp.ne.s32.totalorder %s228, %s230
      %p237 = scmp.eq.s32.totalorder %s31, 1
      %p238 = por %p236, %p237
      %p239 = scmp.ne.s32.totalorder %s230, %s231
      %p240 = scmp.eq.s32.totalorder %s31, 0
      %p241 = por %p239, %p240
      %p242 = scmp.ne.s32.totalorder %s230, %s231
      %p243 = scmp.eq.s32.totalorder %s32, 1
      %p244 = por %p242, %p243
      %p246 = scmp.ne.s32.totalorder %s231, %s245
      %p247 = scmp.eq.s32.totalorder %s32, 0
      %p248 = por %p246, %p247
      %s250 = sadd.s32 %s249, 1
      %p253 = scmp.eq.s32.totalorder %s26, 1
      %p254 = scmp.ne.s32.totalorder %s249, %s251
      %p255 = scmp.eq.s32.totalorder %s26, 0
      %p256 = por %p254, %p255
      %p257 = scmp.ne.s32.totalorder %s249, %s251
      %p258 = scmp.eq.s32.totalorder %s31, 1
      %p259 = por %p257, %p258
      %p260 = scmp.ne.s32.totalorder %s251, %s252
      %p261 = scmp.eq.s32.totalorder %s31, 0
      %p262 = por %p260, %p261
      %p263 = scmp.ne.s32.totalorder %s251, %s252
      %p264 = scmp.eq.s32.totalorder %s32, 1
      %p265 = por %p263, %p264
      %p267 = scmp.ne.s32.totalorder %s252, %s266
      %p268 = scmp.eq.s32.totalorder %s32, 0
      %p269 = por %p267, %p268
      %s270 = ssub.s32 %s26, %s33
      %p271 = scmp.eq.s32.totalorder %s270, 0
      %s273 = sadd.s32 %s272, 1
      %s274 = scalar_select %p271, %s272, %s273
      %p277 = pneg %p271
      %p278 = scmp.eq.s32.totalorder %s26, 1
      %p279 = por %p277, %p278
      %p280 = scmp.ne.s32.totalorder %s272, %s275
      %p281 = scmp.eq.s32.totalorder %s26, 0
      %p282 = por %p280, %p281
      %p283 = scmp.ne.s32.totalorder %s272, %s275
      %p284 = scmp.eq.s32.totalorder %s31, 1
      %p285 = por %p283, %p284
      %p286 = scmp.ne.s32.totalorder %s275, %s276
      %p287 = scmp.eq.s32.totalorder %s31, 0
      %p288 = por %p286, %p287
      %p289 = scmp.ne.s32.totalorder %s275, %s276
      %p290 = scmp.eq.s32.totalorder %s32, 1
      %p291 = por %p289, %p290
      %p293 = scmp.ne.s32.totalorder %s276, %s292
      %p294 = scmp.eq.s32.totalorder %s32, 0
      %p295 = por %p293, %p294
      %p296 = scmp.le.s32.totalorder 1, %s26
      %p297 = scmp.lt.s32.totalorder %s26, 3
      %p298 = pnand %p296, %p297
      %p299 = pneg %p298
      // Predicated region
      $region9: #{tpu_custom_call.1} parent=5 // pred_check
        _
      $region10: #{tpu_custom_call.1} parent=5 // pred_check_branch
        %301 = sbr.rel (%p298) target = $region12
      $region11: #{tpu_custom_call.1} parent=5 // pred_region
        %s302 = ssub.s32 %s26, 1
        // Predicated region
        $region13: #{tpu_custom_call.1} parent=11 // pred_check
          %p303 = pneg %p73
        $region14: #{tpu_custom_call.1} parent=11 // pred_check_branch
          %305 = sbr.rel (%p303) target = $region16
        $region15: #{tpu_custom_call.1} parent=11 // pred_region
          _
        $region16: #{tpu_custom_call.1} parent=11 // pred_fallthru
          _
        // Predicated region
        $region17: #{tpu_custom_call.1} parent=11 // pred_check
          %p306 = pneg %p94
        $region18: #{tpu_custom_call.1} parent=11 // pred_check_branch
          %308 = sbr.rel (%p306) target = $region20
        $region19: #{tpu_custom_call.1} parent=11 // pred_region
          %s310 = ssub.s32 256, 256
          %311 = vsyncadd [#allocation6], %s310
          %s313 = sshll.u32 [#allocation5], 4
          %s314 = int_to_ptr.vmem [resolvable:$true] %s313
          %316 = dma.hbm_to_vmem [thread:$0]  %s2, 256, %s314, [#allocation6]
        $region20: #{tpu_custom_call.1} parent=11 // pred_fallthru
          _
        // Predicated region
        $region21: #{tpu_custom_call.1} parent=11 // pred_check
          %p317 = pneg %p115
        $region22: #{tpu_custom_call.1} parent=11 // pred_check_branch
          %319 = sbr.rel (%p317) target = $region24
        $region23: #{tpu_custom_call.1} parent=11 // pred_region
          %s321 = ssub.s32 256, 256
          %322 = vsyncadd [#allocation6], %s321
          %s324 = sshll.u32 [#allocation7], 4
          %s325 = int_to_ptr.vmem [resolvable:$true] %s324
          %327 = dma.hbm_to_vmem [thread:$0]  %s3, 256, %s325, [#allocation6]
        $region24: #{tpu_custom_call.1} parent=11 // pred_fallthru
          _
        // Predicated region
        $region25: #{tpu_custom_call.1} parent=11 // pred_check
          %p328 = pneg %p136
        $region26: #{tpu_custom_call.1} parent=11 // pred_check_branch
          %330 = sbr.rel (%p328) target = $region28
        $region27: #{tpu_custom_call.1} parent=11 // pred_region
          _
        $region28: #{tpu_custom_call.1} parent=11 // pred_fallthru
          _
        // Predicated region
        $region29: #{tpu_custom_call.1} parent=11 // pred_check
          %p331 = pneg %p157
        $region30: #{tpu_custom_call.1} parent=11 // pred_check_branch
          %333 = sbr.rel (%p331) target = $region32
        $region31: #{tpu_custom_call.1} parent=11 // pred_region
          %s335 = ssub.s32 256, 256
          %336 = vsyncadd [#allocation9], %s335
          %s338 = sshll.u32 [#allocation8], 4
          %s339 = int_to_ptr.vmem [resolvable:$true] %s338
          %341 = dma.hbm_to_vmem [thread:$0]  %s5, 256, %s339, [#allocation9]
        $region32: #{tpu_custom_call.1} parent=11 // pred_fallthru
          _
        // Predicated region
        $region33: #{tpu_custom_call.1} parent=11 // pred_check
          %p342 = pneg %p178
        $region34: #{tpu_custom_call.1} parent=11 // pred_check_branch
          %344 = sbr.rel (%p342) target = $region36
        $region35: #{tpu_custom_call.1} parent=11 // pred_region
          %s346 = ssub.s32 256, 256
          %347 = vsyncadd [#allocation9], %s346
          %s349 = sshll.u32 [#allocation10], 4
          %s350 = int_to_ptr.vmem [resolvable:$true] %s349
          %352 = dma.hbm_to_vmem [thread:$0]  %s6, 256, %s350, [#allocation9]
        $region36: #{tpu_custom_call.1} parent=11 // pred_fallthru
          _
        // Predicated region
        $region37: #{tpu_custom_call.1} parent=11 // pred_check
          %p353 = pneg %p199
        $region38: #{tpu_custom_call.1} parent=11 // pred_check_branch
          %355 = sbr.rel (%p353) target = $region40
        $region39: #{tpu_custom_call.1} parent=11 // pred_region
          %s357 = ssub.s32 256, 256
          %358 = vsyncadd [#allocation12], %s357
          %s360 = sshll.u32 [#allocation11], 4
          %s361 = int_to_ptr.vmem [resolvable:$true] %s360
          %363 = dma.hbm_to_vmem [thread:$0]  %s7, 256, %s361, [#allocation12]
        $region40: #{tpu_custom_call.1} parent=11 // pred_fallthru
          _
        // Predicated region
        $region41: #{tpu_custom_call.1} parent=11 // pred_check
          %p364 = pneg %p220
        $region42: #{tpu_custom_call.1} parent=11 // pred_check_branch
          %366 = sbr.rel (%p364) target = $region44
        $region43: #{tpu_custom_call.1} parent=11 // pred_region
          _
        $region44: #{tpu_custom_call.1} parent=11 // pred_fallthru
          _
        // Predicated region
        $region45: #{tpu_custom_call.1} parent=11 // pred_check
          %p367 = pneg %p241
        $region46: #{tpu_custom_call.1} parent=11 // pred_check_branch
          %369 = sbr.rel (%p367) target = $region48
        $region47: #{tpu_custom_call.1} parent=11 // pred_region
          _
        $region48: #{tpu_custom_call.1} parent=11 // pred_fallthru
          _
        // Predicated region
        $region49: #{tpu_custom_call.1} parent=11 // pred_check
          %p370 = pneg %p262
        $region50: #{tpu_custom_call.1} parent=11 // pred_check_branch
          %372 = sbr.rel (%p370) target = $region52
        $region51: #{tpu_custom_call.1} parent=11 // pred_region
          _
        $region52: #{tpu_custom_call.1} parent=11 // pred_fallthru
          _
      $region12: #{tpu_custom_call.1} parent=5 // pred_fallthru
        _
      %p373 = scmp.lt.s32.totalorder %s26, 2
      // Predicated region
      $region53: #{tpu_custom_call.1} parent=5 // pred_check
        %p374 = pneg %p373
      $region54: #{tpu_custom_call.1} parent=5 // pred_check_branch
        %376 = sbr.rel (%p374) target = $region56
      $region55: #{tpu_custom_call.1} parent=5 // pred_region
        // Predicated region
        $region57: #{tpu_custom_call.1} parent=55 // pred_check
          %p377 = pneg %p46
        $region58: #{tpu_custom_call.1} parent=55 // pred_check_branch
          %379 = sbr.rel (%p377) target = $region60
        $region59: #{tpu_custom_call.1} parent=55 // pred_region
          %s380 = sand.u32 %s36, 1
          %s381 = scalar_lea.sflag [#allocation3], %s380
          %s382 = sand.u32 %s36, 1
          %s383 = smul.addr %s382, 16
          %s384 = scalar_lea.vmem [#allocation2], %s383
          %s386 = ssub.s32 256, 256
          %387 = vsyncadd %s381, %s386
          %s388 = smul.addr %s26, 2
          %s389 = smul.addr %s388, 128
          %s390 = scalar_lea.hbm %s0, %s389
          %s392 = sshll.u32 %s384, 4
          %s393 = int_to_ptr.vmem [resolvable:$true] %s392
          %395 = dma.hbm_to_vmem [thread:$0]  %s390, 256, %s393, %s381
        $region60: #{tpu_custom_call.1} parent=55 // pred_fallthru
          _
      $region56: #{tpu_custom_call.1} parent=5 // pred_fallthru
        _
      %p396 = scmp.le.s32.totalorder 1, %s26
      %p397 = scmp.lt.s32.totalorder %s26, 3
      %p398 = pnand %p396, %p397
      %p399 = pneg %p398
      // Predicated region
      $region61: #{tpu_custom_call.1} parent=5 // pred_check
        _
      $region62: #{tpu_custom_call.1} parent=5 // pred_check_branch
        %401 = sbr.rel (%p398) target = $region64
      $region63: #{tpu_custom_call.1} parent=5 // pred_region
        %s402 = ssub.s32 %s26, 1
        %s403 = sand.u32 %s39, 1
        %s404 = scalar_lea.sflag [#allocation3], %s403
        %s405 = sand.u32 %s39, 1
        %s406 = smul.addr %s405, 16
        %s407 = scalar_lea.vmem [#allocation2], %s406
        // Predicated region
        $region65: #{tpu_custom_call.1} parent=63 // pred_check
          %p408 = pneg %p52
        $region66: #{tpu_custom_call.1} parent=63 // pred_check_branch
          %410 = sbr.rel (%p408) target = $region68
        $region67: #{tpu_custom_call.1} parent=63 // pred_region
          %411 = dma.done %s404, 256
        $region68: #{tpu_custom_call.1} parent=63 // pred_fallthru
          _
        // Predicated region
        $region69: #{tpu_custom_call.1} parent=63 // pred_check
          %p412 = pneg %p94
        $region70: #{tpu_custom_call.1} parent=63 // pred_check_branch
          %414 = sbr.rel (%p412) target = $region72
        $region71: #{tpu_custom_call.1} parent=63 // pred_region
          %415 = dma.done [#allocation6], 256
        $region72: #{tpu_custom_call.1} parent=63 // pred_fallthru
          _
        // Predicated region
        $region73: #{tpu_custom_call.1} parent=63 // pred_check
          %p416 = pneg %p115
        $region74: #{tpu_custom_call.1} parent=63 // pred_check_branch
          %418 = sbr.rel (%p416) target = $region76
        $region75: #{tpu_custom_call.1} parent=63 // pred_region
          %419 = dma.done [#allocation6], 256
        $region76: #{tpu_custom_call.1} parent=63 // pred_fallthru
          _
        // Predicated region
        $region77: #{tpu_custom_call.1} parent=63 // pred_check
          %p420 = pneg %p157
        $region78: #{tpu_custom_call.1} parent=63 // pred_check_branch
          %422 = sbr.rel (%p420) target = $region80
        $region79: #{tpu_custom_call.1} parent=63 // pred_region
          %423 = dma.done [#allocation9], 256
        $region80: #{tpu_custom_call.1} parent=63 // pred_fallthru
          _
        // Predicated region
        $region81: #{tpu_custom_call.1} parent=63 // pred_check
          %p424 = pneg %p178
        $region82: #{tpu_custom_call.1} parent=63 // pred_check_branch
          %426 = sbr.rel (%p424) target = $region84
        $region83: #{tpu_custom_call.1} parent=63 // pred_region
          %427 = dma.done [#allocation9], 256
        $region84: #{tpu_custom_call.1} parent=63 // pred_fallthru
          _
        // Predicated region
        $region85: #{tpu_custom_call.1} parent=63 // pred_check
          %p428 = pneg %p199
        $region86: #{tpu_custom_call.1} parent=63 // pred_check_branch
          %430 = sbr.rel (%p428) target = $region88
        $region87: #{tpu_custom_call.1} parent=63 // pred_region
          %431 = dma.done [#allocation12], 256
        $region88: #{tpu_custom_call.1} parent=63 // pred_fallthru
          _
        %s432 = sand.u32 %s39, 1
        %s433 = scalar_lea.sflag [#allocation3], %s432
        %s434 = sand.u32 %s39, 1
        %s435 = smul.addr %s434, 16
        %s436 = scalar_lea.vmem [#allocation2], %s435
        %p437 = pneg %p52
        %p438 = pneg %p49
        %p439 = pneg %p73
        %p440 = pneg %p70
        %p441 = pneg %p94
        %p442 = pneg %p91
        %p443 = pneg %p115
        %p444 = pneg %p112
        %p445 = pneg %p136
        %p446 = pneg %p133
        %p447 = pneg %p157
        %p448 = pneg %p154
        %p449 = pneg %p178
        %p450 = pneg %p175
        %p451 = pneg %p199
        %p452 = pneg %p196
        %p453 = pneg %p220
        %p454 = pneg %p217
        %p455 = pneg %p241
        %p456 = pneg %p238
        %p457 = pneg %p262
        %p458 = pneg %p259
        %p459 = pneg %p288
        %p460 = pneg %p285
        %s461 = sand.u32 %s275, 1
        %s462 = scalar_lea.sflag [#allocation4], %s461
        %s463 = sand.u32 %s275, 1
        %s464 = smul.addr %s463, 16
        %s465 = scalar_lea.vmem [#allocation13], %s464
        %v467 = vld [vmem:[%s407] sm:$0xff]
        %v468 = vld [vmem:[%s407 + $0x8] sm:$0xff]
        %469 = vrot.lane.b32.xlu0 %v467, 16
        %v470 = vpop.permute.xlu0 %469
        %471 = vrot.lane.b32.xlu0 %v468, 16
        %v472 = vpop.permute.xlu0 %471
        %v473 = vlaneseq
        %v474 = vand.u32 %v473, 127
        %vm475 = vcmp.lt.s32.totalorder %v474, 16
        %v476 = vsel %vm475, %v470, %v472
        %v477 = vsel %vm475, %v472, %v470
        %478 = vrot.lane.b32.xlu0 %v467, 112
        %v479 = vpop.permute.xlu0 %478
        %480 = vrot.lane.b32.xlu0 %v468, 112
        %v481 = vpop.permute.xlu0 %480
        %vm482 = vcmp.lt.s32.totalorder %v474, 112
        %v483 = vsel %vm482, %v479, %v481
        %v484 = vsel %vm482, %v481, %v479
        %v485 = vld [vmem:[%s1] sm:$0xff]
        %v486 = vld [vmem:[%s1 + $0x8] sm:$0xff]
        %v487 = vmul.f32 %v477, %v485
        %v488 = vmul.f32 %v476, %v486
        %v489 = vld [vmem:[#allocation5] sm:$0xff]
        %v490 = vld [vmem:[#allocation5 + $0x8] sm:$0xff]
        %v491 = vmul.f32 %v467, %v489
        %v492 = vmul.f32 %v468, %v490
        %v493 = vadd.f32 %v487, %v491
        %v494 = vadd.f32 %v488, %v492
        %v495 = vld [vmem:[#allocation7] sm:$0xff]
        %v496 = vld [vmem:[#allocation7 + $0x8] sm:$0xff]
        %v497 = vmul.f32 %v483, %v495
        %v498 = vmul.f32 %v484, %v496
        %v499 = vadd.f32 %v493, %v497
        %v500 = vadd.f32 %v494, %v498
        %v501 = vld [vmem:[%s4] sm:$0xff]
        %v502 = vld [vmem:[%s4 + $0x8] sm:$0xff]
        %v503 = vadd.f32 %v499, %v501
        %v504 = vadd.f32 %v500, %v502
        %505 = vrot.lane.b32.xlu0 %v503, 16
        %v506 = vpop.permute.xlu0 %505
        %507 = vrot.lane.b32.xlu0 %v504, 16
        %v508 = vpop.permute.xlu0 %507
        %v509 = vsel %vm475, %v506, %v508
        %v510 = vsel %vm475, %v508, %v506
        %v511 = vadd.f32 %v503, %v510
        %v512 = vadd.f32 %v504, %v509
        %513 = vrot.lane.b32.xlu0 %v511, 32
        %v514 = vpop.permute.xlu0 %513
        %515 = vrot.lane.b32.xlu0 %v512, 32
        %v516 = vpop.permute.xlu0 %515
        %vm517 = vcmp.lt.s32.totalorder %v474, 32
        %v518 = vsel %vm517, %v514, %v516
        %v519 = vsel %vm517, %v516, %v514
        %v520 = vadd.f32 %v511, %v519
        %v521 = vadd.f32 %v512, %v518
        %522 = vrot.lane.b32.xlu0 %v520, 64
        %v523 = vpop.permute.xlu0 %522
        %524 = vrot.lane.b32.xlu0 %v521, 64
        %v525 = vpop.permute.xlu0 %524
        %vm526 = vcmp.lt.s32.totalorder %v474, 64
        %v527 = vsel %vm526, %v523, %v525
        %v528 = vsel %vm526, %v525, %v523
        %v529 = vadd.f32 %v520, %v528
        %v530 = vadd.f32 %v521, %v527
        %v531 = vadd.f32 %v529, %v530
        %v532 = vmul.f32 %v531, 0.0625
        %533 = vrot.lane.b32.xlu0 %v532, 1
        %v534 = vpop.permute.xlu0 %533
        %535 = vrot.lane.b32.xlu0 %v532, 127
        %v536 = vpop.permute.xlu0 %535
        %v537 = vld [vmem:[#allocation8] sm:$0xff]
        %v538 = vld [vmem:[#allocation8 + $0x8] sm:$0xff]
        %v539 = vmul.f32 %v534, %v537
        %v540 = vmul.f32 %v534, %v538
        %v541 = vld [vmem:[#allocation10] sm:$0xff]
        %v542 = vld [vmem:[#allocation10 + $0x8] sm:$0xff]
        %v543 = vmul.f32 %v532, %v541
        %v544 = vmul.f32 %v532, %v542
        %v545 = vadd.f32 %v539, %v543
        %v546 = vadd.f32 %v540, %v544
        %v547 = vld [vmem:[#allocation11] sm:$0xff]
        %v548 = vld [vmem:[#allocation11 + $0x8] sm:$0xff]
        %v549 = vmul.f32 %v536, %v547
        %v550 = vmul.f32 %v536, %v548
        %v551 = vadd.f32 %v545, %v549
        %v552 = vadd.f32 %v546, %v550
        %v553 = vld [vmem:[%s8] sm:$0xff]
        %555 = vset.pattern.permute.xlu0 0
        %556 = vperm.xlu0 %555, %v553
        %v557 = vpop.permute.xlu0 %556
        %v559 = vadd.f32 %v551, %v557
        %v560 = vadd.f32 %v552, %v557
        %v561 = vxor.u32 %v559, 2147483648
        %v562 = vxor.u32 %v560, 2147483648
        %v563 = vmul.f32 %v561, 1.442695
        %v564 = vpow.pop %v563
        %v565 = vmul.f32 %v562, 1.442695
        %v566 = vpow.pop %v565
        %v567 = vadd.f32 %v564, 1.0
        %v568 = vadd.f32 %v566, 1.0
        %v569 = vrcp.pop %v567
        %v570 = vmul.f32 1.0, %v569
        %v571 = vrcp.pop %v568
        %v572 = vmul.f32 1.0, %v571
        %v573 = vmul.f32 %v559, %v570
        %v574 = vmul.f32 %v560, %v572
        %v575 = vld [vmem:[%s9] sm:$0xf]
        %v576 = vpack.c.bf16 %v573, %v573
        %v577 = vpack.c.bf16 %v574, %v574
        %v578 = vld [vmem:[%s10] sm:$0xff]
        %580 = vset.pattern.permute.xlu0 0
        %581 = vperm.xlu0 %580, %v578
        %v582 = vpop.permute.xlu0 %581
        %vm584 = vcmask 64512
        %v586 = vsel %vm584, %v575, 0
        %vm588 = vcmask 1043456
        %v590 = vsel %vm588, %v576, 0
        %v593 = vsel %vm588, %v577, 0
        %595 = vmatprep.subr.bf16.mxu0 %v593
        %596 = vmatpush1.bf16.msra.mxu0 %v590
        %597 = vmatprep.subr.bf16.mxu0 0
        %598 = vmatpush1.bf16.msra.mxu0 0
        %599 = vmatprep.subr.bf16.mxu0 0
        %600 = vmatpush1.bf16.msra.mxu0 0
        %601 = vmatprep.subr.bf16.mxu0 0
        %602 = vmatpush1.bf16.msra.mxu0 0
        %603 = vmatprep.subr.bf16.mxu0 0
        %604 = vmatpush1.bf16.msra.mxu0 0
        %605 = vmatprep.subr.bf16.mxu0 0
        %606 = vmatpush1.bf16.msra.mxu0 0
        %607 = vmatprep.subr.bf16.mxu0 0
        %608 = vmatpush1.bf16.msra.mxu0 0
        %609 = vmatprep.subr.bf16.mxu0 0
        %610 = vmatpush1.bf16.msra.mxu0 0
        %611 = vmatprep.subr.bf16.mxu0 0
        %612 = vmatpush1.bf16.msra.mxu0 0
        %613 = vmatprep.subr.bf16.mxu0 0
        %614 = vmatpush1.bf16.msra.mxu0 0
        %615 = vmatprep.subr.bf16.mxu0 0
        %616 = vmatpush1.bf16.msra.mxu0 0
        %617 = vmatprep.subr.bf16.mxu0 0
        %618 = vmatpush1.bf16.msra.mxu0 0
        %619 = vmatprep.subr.bf16.mxu0 0
        %620 = vmatpush1.bf16.msra.mxu0 0
        %621 = vmatprep.subr.bf16.mxu0 0
        %622 = vmatpush1.bf16.msra.mxu0 0
        %623 = vmatprep.subr.bf16.mxu0 0
        %624 = vmatpush1.bf16.msra.mxu0 0
        %625 = vmatprep.subr.bf16.mxu0 0
        %626 = vmatpush1.bf16.msra.mxu0 0
        %627 = vmatprep.mubr.bf16.mxu0 0
        %628 = vmatmul.mubr.bf16.gmra.mrb[0].mxu0 %v586
        %v629 = vpop.f32.mrb[0].mxu0
        %v630 = vadd.f32 %v582, %v629
        %v631 = vpop.f32.mrb[0].mxu0
        %v632 = vadd.f32 %v582, %v631
        %v633 = vpop.f32.mrb[0].mxu0
        %v634 = vpop.f32.mrb[0].mxu0
        %635 = vdwg.mxu0
        %v636 = vadd.f32 %v467, %v503
        %v637 = vadd.f32 %v468, %v504
        %v638 = vadd.f32 %v636, %v630
        %v639 = vadd.f32 %v637, %v632
        %v640 = vmax.f32 %v638, 0.0
        %v641 = vmax.f32 %v639, 0.0
        %642 = vst [vmem:[%s465] sm:$0xff] %v640
        %643 = vst [vmem:[%s465 + $0x8] sm:$0xff] %v641
        %s644 = sand.u32 %s275, 1
        %s645 = scalar_lea.sflag [#allocation4], %s644
        %s646 = sand.u32 %s275, 1
        %s647 = smul.addr %s646, 16
        %s648 = scalar_lea.vmem [#allocation13], %s647
        // Predicated region
        $region89: #{tpu_custom_call.1} parent=63 // pred_check
          %p649 = pneg %p285
        $region90: #{tpu_custom_call.1} parent=63 // pred_check_branch
          %651 = sbr.rel (%p649) target = $region92
        $region91: #{tpu_custom_call.1} parent=63 // pred_region
          %s653 = ssub.s32 256, 256
          %654 = vsyncadd %s645, %s653
          %s655 = smul.addr %s31, 2
          %s656 = smul.addr %s655, 128
          %s657 = scalar_lea.hbm %s11, %s656
          %s659 = sshll.u32 %s648, 4
          %s660 = int_to_ptr.vmem [resolvable:$true] %s659
          %662 = dma.vmem_to_hbm [thread:$0]  %s660, 256, %s657, %s645
        $region92: #{tpu_custom_call.1} parent=63 // pred_fallthru
          _
      $region64: #{tpu_custom_call.1} parent=5 // pred_fallthru
        _
      %p663 = scmp.le.s32.totalorder 2, %s26
      // Predicated region
      $region93: #{tpu_custom_call.1} parent=5 // pred_check
        %p664 = pneg %p663
      $region94: #{tpu_custom_call.1} parent=5 // pred_check_branch
        %666 = sbr.rel (%p664) target = $region96
      $region95: #{tpu_custom_call.1} parent=5 // pred_region
        %s667 = ssub.s32 %s26, 2
        // Predicated region
        $region97: #{tpu_custom_call.1} parent=95 // pred_check
          %p668 = pneg %p291
        $region98: #{tpu_custom_call.1} parent=95 // pred_check_branch
          %670 = sbr.rel (%p668) target = $region100
        $region99: #{tpu_custom_call.1} parent=95 // pred_region
          %s671 = sand.u32 %s276, 1
          %s672 = scalar_lea.sflag [#allocation4], %s671
          %s673 = sand.u32 %s276, 1
          %s674 = smul.addr %s673, 16
          %s675 = scalar_lea.vmem [#allocation13], %s674
          %676 = dma.done %s672, 256
        $region100: #{tpu_custom_call.1} parent=95 // pred_fallthru
          _
      $region96: #{tpu_custom_call.1} parent=5 // pred_fallthru
        _
    $region6: #{tpu_custom_call.1} parent=1 // loop_footer
      %s30 = sadd.s32 1, %s26
    $region7: #{tpu_custom_call.1} parent=1 // loop_footer_branch
      %25 = sbr.rel target = $region3
    $region8: #{tpu_custom_call.1} parent=1 // loop_exit
      _
    %677 = vsyncpa [#allocation3], 1
    %s678 = scalar_lea.sflag [#allocation3], 1
    %679 = vsyncpa %s678, 1
    %680 = vsyncpa [#allocation6], 1
    %681 = vsyncpa [#allocation9], 1
    %682 = vsyncpa [#allocation12], 1
    %683 = vsyncpa [#allocation4], 1
    %s684 = scalar_lea.sflag [#allocation4], 1
    %685 = vsyncpa %s684, 1

</llo_original>
